<compile_context>
chip_gen: v7x
topology: tpu7x:2x2x1
jax: 0.10.0
libtpu: 0.0.40
codegen_flags: <defaults>
</compile_context>

<pallas_src>
import math

import jax
import jax.numpy as jnp
from jax import lax
from jax.experimental import pallas as pl
from jax.experimental.pallas import tpu as pltpu

# Plenty for the resident banded weights + activation blocks at these shapes.
# Re-derive when scaling tiles: keep <= ~48 MiB on v7x (64 MiB physical VMEM).
_VMEM_LIMIT = 32 * 1024 * 1024


def _ceil_to(v, m):
    return ((v + m - 1) // m) * m


def _lane_pad_channels(Wo, C):
    """Smallest C' >= C such that Wo*C' is a multiple of 128 (lane-dense)."""
    step = 128 // math.gcd(Wo, 128)
    Cp = _ceil_to(C, step)
    return C if Cp > 4 * C else Cp


def _images_per_step(B, Ho, target_rows=128):
    """Images per grid step: biggest divisor of B with Bt*Ho <= target_rows.

    Keeps per-step fixed overhead low and the conv-GEMM M dimension as large
    as the problem allows; for larger B this still leaves >= 2 grid steps so
    both TensorCores get work on v7x.
    """
    if Ho % 8 != 0:
        return 1
    best = 1
    for d in range(1, B + 1):
        if B % d == 0 and d * Ho <= target_rows:
            best = d
    return best


# ---------------------------------------------------------------------------
# The single fused kernel.
#   x1 : (M, W*Cin)     bf16, each source row duplicated 2x (M = Bt*Ho rows)
#   x2 : (M, Wo*C2)     bf16, skip connection, channels-last on lanes
#   wup: (W*Cin, 2*Lup) bf16, [transpose-conv band for even rows | odd rows]
#   w1u/w1x/w2: (3, L*, N) bf16, banded 3x3 conv weights (one band per kh tap)
#   b* : (1, L*/N)      f32 bias rows (bias replicated along W)
#   out: (M, N)         bf16, N = Wo*Cout_pad (128-lane dense)
# ---------------------------------------------------------------------------
def _build_decode_kernel(M, Ho, Lup):
    def kernel(x1_ref, x2_ref, wup_ref, w1u_ref, w1x_ref, w2_ref,
               bup_ref, b1_ref, b2_ref, o_ref):
        x1 = x1_ref[...]
        x2 = x2_ref[...]

        rows = lax.broadcasted_iota(jnp.int32, (M, 1), 0)
        is_odd = (rows % 2) == 1           # output-row parity (Ho is even)
        is_top = (rows % Ho) == 0          # first row of each image in block
        is_bot = (rows % Ho) == (Ho - 1)   # last row of each image in block

        # --- ConvTranspose2d(k=2, s=2): one GEMM + per-row parity select ----
        ures = jnp.dot(x1, wup_ref[...], preferred_element_type=jnp.float32)
        u = jnp.where(is_odd, ures[:, Lup:], ures[:, :Lup]) + bup_ref[...]
        u = u.astype(jnp.bfloat16)

        # --- 3x3 conv (padding=1) + ReLU; W taps folded into banded weights,
        #     H taps handled with a row shift + per-image border masks -------
        def conv3x3_relu(groups, b_ref):
            taps = []
            for kh in range(3):
                acc = None
                for v, w_ref in groups:
                    p = jnp.dot(v, w_ref[kh],
                                preferred_element_type=jnp.float32)
                    acc = p if acc is None else acc + p
                taps.append(acc)
            # Output row y takes the kh=0 tap from row y-1 and the kh=2 tap
            # from row y+1; shift rows and zero the per-image border rows.
            y = taps[1]
            y = y + jnp.where(is_top, 0.0, jnp.roll(taps[0], 1, axis=0))
            y = y + jnp.where(is_bot, 0.0, jnp.roll(taps[2], -1, axis=0))
            return jnp.maximum(y + b_ref[...], 0.0)

        # conv1 fused with the channel concat: [up | x2] as two lane groups.
        h1 = conv3x3_relu([(u, w1u_ref), (x2, w1x_ref)], b1_ref)
        h1 = h1.astype(jnp.bfloat16)
        h2 = conv3x3_relu([(h1, w2_ref)], b2_ref)

        o_ref[...] = h2.astype(o_ref.dtype)

    return kernel


# ---------------------------------------------------------------------------
# One-time parameter re-layout (hoisted out of the forward path).
# ---------------------------------------------------------------------------
def _banded_conv_weight(w_hwio, Wout):
    # (3, 3, C, Co) -> (3, Wout*C, Wout*Co)
    # band[kh, x*C + c, w*Co + co] = w_hwio[kh, kw, c, co] where x = w + kw - 1
    # (out-of-range taps are simply absent -> zero padding along W).
    _, _, C, Co = w_hwio.shape
    band = jnp.zeros((3, Wout, C, Wout, Co), jnp.float32)
    for kw in range(3):
        sel = jnp.eye(Wout, Wout, k=1 - kw, dtype=jnp.float32)   # sel[x, w]
        band = band + jnp.einsum("hco,xw->hxcwo",
                                 w_hwio[:, kw].astype(jnp.float32), sel)
    return band.reshape(3, Wout * C, Wout * Co)


def prepare_params(params, H, W):
    """Banded weights, channel padding, bias rows, bf16 casts (not jitted)."""
    del H  # only the width enters the banded layouts
    f32, bf = jnp.float32, jnp.bfloat16

    wt = params["up_w"].astype(f32)            # (Cin, Cup, 2, 2) torch layout
    Cin, Cup = wt.shape[0], wt.shape[1]
    Cout = params["w1"].shape[3]
    Wo = 2 * W

    Cup_p = _lane_pad_channels(Wo, Cup)
    Cout_p = _lane_pad_channels(Wo, Cout)
    Lup, N = Wo * Cup_p, Wo * Cout_p

    # ConvTranspose2d(k=2,s=2) banded GEMM weight, one band per row parity di:
    #   row (w*Cin + c) -> col ((2w + dj)*Cup_p + oc), value wt[c, oc, di, dj]
    wt = jnp.pad(wt, ((0, 0), (0, Cup_p - Cup), (0, 0), (0, 0)))
    bands = []
    for di in range(2):
        b = jnp.zeros((W, Cin, Wo, Cup_p), f32)
        for dj in range(2):
            sel = jnp.zeros((W, Wo), f32).at[
                jnp.arange(W), 2 * jnp.arange(W) + dj].set(1.0)
            b = b + jnp.einsum("co,wx->wcxo", wt[:, :, di, dj], sel)
        bands.append(b.reshape(W * Cin, Lup))
    wup_cat = jnp.concatenate(bands, axis=1)             # (W*Cin, 2*Lup)
    bup_row = jnp.tile(jnp.pad(params["up_b"].astype(f32), (0, Cup_p - Cup)),
                       Wo).reshape(1, Lup)

    # conv1 split along the concat boundary (input channels = [up | x2]);
    # output channels padded so HBM stores are 128-lane dense.
    w1 = jnp.pad(params["w1"].astype(f32),
                 ((0, 0), (0, 0), (0, 0), (0, Cout_p - Cout)))
    w1u = jnp.pad(w1[:, :, :Cup, :],
                  ((0, 0), (0, 0), (0, Cup_p - Cup), (0, 0)))
    w1x = w1[:, :, Cup:, :]
    w2 = jnp.pad(params["w2"].astype(f32),
                 ((0, 0), (0, 0), (0, Cout_p - Cout), (0, Cout_p - Cout)))

    b1_row = jnp.tile(jnp.pad(params["b1"].astype(f32), (0, Cout_p - Cout)),
                      Wo).reshape(1, N)
    b2_row = jnp.tile(jnp.pad(params["b2"].astype(f32), (0, Cout_p - Cout)),
                      Wo).reshape(1, N)

    return {
        "wup_cat": wup_cat.astype(bf),
        "bup_row": bup_row,
        "w1u_band": _banded_conv_weight(w1u, Wo).astype(bf),
        "w1x_band": _banded_conv_weight(w1x, Wo).astype(bf),
        "w2_band": _banded_conv_weight(w2, Wo).astype(bf),
        "b1_row": b1_row,
        "b2_row": b2_row,
    }


# ---------------------------------------------------------------------------
# decode.forward
# ---------------------------------------------------------------------------
def decode_forward(pp, x1_nchw, x2_nchw, *, out_channels):
    B, Cin, H, W = x1_nchw.shape
    C2 = x2_nchw.shape[1]
    Ho, Wo = 2 * H, 2 * W
    bf = jnp.bfloat16

    Kup = W * Cin
    L2 = Wo * C2
    Lup = pp["bup_row"].shape[1]
    N = pp["b1_row"].shape[1]
    Cout_p = N // Wo

    # NCHW -> channels-last with W*C flattened onto the lane axis (bf16).
    # x1 rows are duplicated 2x along H so the transpose-conv GEMM emits the
    # upsampled rows in order (parity handled inside the kernel).
    x1m = jnp.transpose(x1_nchw, (0, 2, 3, 1)).reshape(B, H, Kup).astype(bf)
    x1r = jnp.repeat(x1m, 2, axis=1).reshape(B * Ho, Kup)
    x2m = jnp.transpose(x2_nchw, (0, 2, 3, 1)).reshape(B * Ho, L2).astype(bf)

    Bt = _images_per_step(B, Ho)
    Mrows = Bt * Ho
    grid = (B // Bt,)
    kernel = _build_decode_kernel(Mrows, Ho, Lup)

    h2 = pl.pallas_call(
        kernel,
        out_shape=jax.ShapeDtypeStruct((B * Ho, N), bf),
        grid_spec=pltpu.PrefetchScalarGridSpec(
            num_scalar_prefetch=0,
            grid=grid,
            in_specs=[
                pl.BlockSpec((Mrows, Kup), lambda i: (i, 0)),
                pl.BlockSpec((Mrows, L2), lambda i: (i, 0)),
                # Weights / biases stay resident (constant index maps).
                # (At larger W, add pipeline_mode=pl.Buffered(1) here and tile W.)
                pl.BlockSpec(pp["wup_cat"].shape, lambda i: (0, 0)),
                pl.BlockSpec(pp["w1u_band"].shape, lambda i: (0, 0, 0)),
                pl.BlockSpec(pp["w1x_band"].shape, lambda i: (0, 0, 0)),
                pl.BlockSpec(pp["w2_band"].shape, lambda i: (0, 0, 0)),
                pl.BlockSpec((1, Lup), lambda i: (0, 0)),
                pl.BlockSpec((1, N), lambda i: (0, 0)),
                pl.BlockSpec((1, N), lambda i: (0, 0)),
            ],
            out_specs=pl.BlockSpec((Mrows, N), lambda i: (i, 0)),
        ),
        compiler_params=pltpu.CompilerParams(
            dimension_semantics=("parallel",),
            vmem_limit_bytes=_VMEM_LIMIT,
        ),
    )(x1r, x2m, pp["wup_cat"], pp["w1u_band"], pp["w1x_band"], pp["w2_band"],
      pp["bup_row"], pp["b1_row"], pp["b2_row"])

    out = h2.reshape(B, Ho, Wo, Cout_p)[..., :out_channels]
    return jnp.transpose(out, (0, 3, 1, 2)).astype(jnp.float32)   # NCHW f32


# ---------------------------------------------------------------------------
# Pure-JAX reference.  mixed_precision=True mirrors the kernel's bf16 MXU
# operands / f32 accumulation so the comparison is tight.
# ---------------------------------------------------------------------------
def decode_reference(params, x1_nchw, x2_nchw, *, mixed_precision):
    cast = (lambda a: a.astype(jnp.bfloat16)) if mixed_precision else (lambda a: a)
    x1 = cast(jnp.transpose(x1_nchw, (0, 2, 3, 1)))
    x2 = cast(jnp.transpose(x2_nchw, (0, 2, 3, 1)))
    wt = cast(params["up_w"])
    B, H, W, _ = x1.shape
    Cup = params["up_w"].shape[1]

    up = jnp.einsum("bhwc,codq->bhdwqo", x1, wt,
                    preferred_element_type=jnp.float32)
    up = up.reshape(B, 2 * H, 2 * W, Cup) + params["up_b"]
    x = jnp.concatenate([cast(up), x2], axis=-1)

    def conv(v, w, b):
        y = jax.lax.conv_general_dilated(
            v, cast(w), window_strides=(1, 1), padding=((1, 1), (1, 1)),
            dimension_numbers=("NHWC", "HWIO", "NHWC"),
            preferred_element_type=jnp.float32)
        return jnp.maximum(y + b, 0.0)

    h = cast(conv(x, params["w1"], params["b1"]))
    h = conv(h, params["w2"], params["b2"])
    return jnp.transpose(h, (0, 3, 1, 2))


if __name__ == "__main__":
    in_channels, out_channels = 8, 4
    B, H, W = 2, 8, 8  # x1 spatial; x2 is 2x larger

    key = jax.random.PRNGKey(0)
    ks = jax.random.split(key, 6)
    params = {
        # ConvTranspose2d weight: (in, in//2, 2, 2)
        "up_w": jax.random.normal(
            ks[0], (in_channels, in_channels // 2, 2, 2), jnp.float32
        ) * (2.0 / (in_channels * 4)) ** 0.5,
        "up_b": jax.random.normal(ks[1], (in_channels // 2,), jnp.float32) * 0.01,
        # Conv2d weights (HWIO), kaiming-normal fan_out style scaling; zero bias
        "w1": jax.random.normal(
            ks[2], (3, 3, in_channels, out_channels), jnp.float32
        ) * (2.0 / (out_channels * 9)) ** 0.5,
        "b1": jnp.zeros((out_channels,), jnp.float32),
        "w2": jax.random.normal(
            ks[3], (3, 3, out_channels, out_channels), jnp.float32
        ) * (2.0 / (out_channels * 9)) ** 0.5,
        "b2": jnp.zeros((out_channels,), jnp.float32),
    }

    x1 = jax.random.normal(ks[4], (B, in_channels, H, W), jnp.float32)              # NCHW
    x2 = jax.random.normal(ks[5], (B, in_channels // 2, 2 * H, 2 * W), jnp.float32)

    pp = prepare_params(params, H, W)      # one-time weight re-layout (not in forward)
    fwd = jax.jit(decode_forward, static_argnames=("out_channels",))
    out = fwd(pp, x1, x2, out_channels=out_channels)
    out = jax.block_until_ready(out)

    assert out.shape == (B, out_channels, 2 * H, 2 * W), out.shape

    # Tight check against a reference mirroring the kernel's bf16/f32 mix
    # (including the final bf16 HBM store).
    ref_mixed = decode_reference(params, x1, x2, mixed_precision=True)
    ref_mixed_q = ref_mixed.astype(jnp.bfloat16).astype(jnp.float32)
    err = float(jnp.max(jnp.abs(out - ref_mixed_q)))
    assert jnp.allclose(out, ref_mixed_q, rtol=1e-2, atol=1e-2), err

    # Loose sanity check against the full-f32 reference (bf16 quantization only).
    ref_f32 = decode_reference(params, x1, x2, mixed_precision=False)
    err32 = float(jnp.max(jnp.abs(out - ref_f32)))
    assert jnp.allclose(out, ref_f32, rtol=0.25, atol=0.25), err32

    print("KERNEL_OK")
</pallas_src>

<mosaic_0001>
module attributes {stable_mosaic.version = 11 : i64} {
  func.func @kernel(%arg0: i32, %arg1: memref<32x64xbf16, #tpu.memory_space<vmem>>, %arg2: memref<32x64xbf16, #tpu.memory_space<vmem>>, %arg3: memref<64x256xbf16, #tpu.memory_space<vmem>>, %arg4: memref<3x128x128xbf16, #tpu.memory_space<vmem>>, %arg5: memref<3x64x128xbf16, #tpu.memory_space<vmem>>, %arg6: memref<3x128x128xbf16, #tpu.memory_space<vmem>>, %arg7: memref<1x128xf32, #tpu.memory_space<vmem>>, %arg8: memref<1x128xf32, #tpu.memory_space<vmem>>, %arg9: memref<1x128xf32, #tpu.memory_space<vmem>>, %arg10: memref<32x128xbf16, #tpu.memory_space<vmem>>) attributes {dimension_semantics = [#tpu.dimension_semantics<parallel>], iteration_bounds = array<i64: 1>, scalar_prefetch = 0 : i64, scratch_operands = 0 : i64, tpu.core_type = #tpu.core_type<tc>, window_params = [{transform_indices = @transform_0, window_bounds = array<i64: 32, 64>}, {transform_indices = @transform_1, window_bounds = array<i64: 32, 64>}, {pipeline_mode = #tpu.pipeline_mode<synchronous>, transform_indices = @transform_2, window_bounds = array<i64: 64, 256>}, {pipeline_mode = #tpu.pipeline_mode<synchronous>, transform_indices = @transform_3, window_bounds = array<i64: 3, 128, 128>}, {pipeline_mode = #tpu.pipeline_mode<synchronous>, transform_indices = @transform_4, window_bounds = array<i64: 3, 64, 128>}, {pipeline_mode = #tpu.pipeline_mode<synchronous>, transform_indices = @transform_5, window_bounds = array<i64: 3, 128, 128>}, {pipeline_mode = #tpu.pipeline_mode<synchronous>, transform_indices = @transform_6, window_bounds = array<i64: 1, 128>}, {pipeline_mode = #tpu.pipeline_mode<synchronous>, transform_indices = @transform_7, window_bounds = array<i64: 1, 128>}, {pipeline_mode = #tpu.pipeline_mode<synchronous>, transform_indices = @transform_8, window_bounds = array<i64: 1, 128>}, {transform_indices = @transform_9, window_bounds = array<i64: 32, 128>}]} {
    %c0 = arith.constant 0 : index
    %c0_0 = arith.constant 0 : index
    %0 = vector.load %arg1[%c0, %c0_0] : memref<32x64xbf16, #tpu.memory_space<vmem>>, vector<32x64xbf16>
    %c0_1 = arith.constant 0 : index
    %c0_2 = arith.constant 0 : index
    %1 = vector.load %arg2[%c0_1, %c0_2] : memref<32x64xbf16, #tpu.memory_space<vmem>>, vector<32x64xbf16>
    %2 = tpu.iota {dimensions = array<i32: 0>} : vector<32x1xi32>
    %c2_i32 = arith.constant 2 : i32
    %c0_i32 = arith.constant 0 : i32
    %3 = arith.cmpi eq, %c2_i32, %c0_i32 : i32
    %c1_i32 = arith.constant 1 : i32
    %4 = arith.select %3, %c1_i32, %c2_i32 : i32
    %5 = vector.broadcast %4 : i32 to vector<32x1xi32>
    %6 = arith.remsi %2, %5 : vector<32x1xi32>
    %c0_i32_3 = arith.constant 0 : i32
    %7 = vector.broadcast %c0_i32_3 : i32 to vector<32x1xi32>
    %8 = arith.cmpi ne, %6, %7 : vector<32x1xi32>
    %c0_i32_4 = arith.constant 0 : i32
    %9 = vector.broadcast %c0_i32_4 : i32 to vector<32x1xi32>
    %10 = arith.cmpi slt, %6, %9 : vector<32x1xi32>
    %c0_i32_5 = arith.constant 0 : i32
    %11 = arith.cmpi slt, %4, %c0_i32_5 : i32
    %12 = vector.broadcast %11 : i1 to vector<32x1xi1>
    %13 = vector.broadcast %12 : vector<32x1xi1> to vector<32x1xi1>
    %14 = arith.xori %10, %13 : vector<32x1xi1>
    %15 = arith.andi %14, %8 : vector<32x1xi1>
    %16 = vector.broadcast %4 : i32 to vector<32x1xi32>
    %17 = arith.addi %6, %16 : vector<32x1xi32>
    %18 = arith.select %15, %17, %6 : vector<32x1xi1>, vector<32x1xi32>
    %c1_i32_6 = arith.constant 1 : i32
    %19 = vector.broadcast %c1_i32_6 : i32 to vector<32x1xi32>
    %20 = arith.cmpi eq, %18, %19 : vector<32x1xi32>
    %c16_i32 = arith.constant 16 : i32
    %c0_i32_7 = arith.constant 0 : i32
    %21 = arith.cmpi eq, %c16_i32, %c0_i32_7 : i32
    %c1_i32_8 = arith.constant 1 : i32
    %22 = arith.select %21, %c1_i32_8, %c16_i32 : i32
    %23 = vector.broadcast %22 : i32 to vector<32x1xi32>
    %24 = arith.remsi %2, %23 : vector<32x1xi32>
    %c0_i32_9 = arith.constant 0 : i32
    %25 = vector.broadcast %c0_i32_9 : i32 to vector<32x1xi32>
    %26 = arith.cmpi ne, %24, %25 : vector<32x1xi32>
    %c0_i32_10 = arith.constant 0 : i32
    %27 = vector.broadcast %c0_i32_10 : i32 to vector<32x1xi32>
    %28 = arith.cmpi slt, %24, %27 : vector<32x1xi32>
    %c0_i32_11 = arith.constant 0 : i32
    %29 = arith.cmpi slt, %22, %c0_i32_11 : i32
    %30 = vector.broadcast %29 : i1 to vector<32x1xi1>
    %31 = vector.broadcast %30 : vector<32x1xi1> to vector<32x1xi1>
    %32 = arith.xori %28, %31 : vector<32x1xi1>
    %33 = arith.andi %32, %26 : vector<32x1xi1>
    %34 = vector.broadcast %22 : i32 to vector<32x1xi32>
    %35 = arith.addi %24, %34 : vector<32x1xi32>
    %36 = arith.select %33, %35, %24 : vector<32x1xi1>, vector<32x1xi32>
    %c0_i32_12 = arith.constant 0 : i32
    %37 = vector.broadcast %c0_i32_12 : i32 to vector<32x1xi32>
    %38 = arith.cmpi eq, %36, %37 : vector<32x1xi32>
    %c16_i32_13 = arith.constant 16 : i32
    %c0_i32_14 = arith.constant 0 : i32
    %39 = arith.cmpi eq, %c16_i32_13, %c0_i32_14 : i32
    %c1_i32_15 = arith.constant 1 : i32
    %40 = arith.select %39, %c1_i32_15, %c16_i32_13 : i32
    %41 = vector.broadcast %40 : i32 to vector<32x1xi32>
    %42 = arith.remsi %2, %41 : vector<32x1xi32>
    %c0_i32_16 = arith.constant 0 : i32
    %43 = vector.broadcast %c0_i32_16 : i32 to vector<32x1xi32>
    %44 = arith.cmpi ne, %42, %43 : vector<32x1xi32>
    %c0_i32_17 = arith.constant 0 : i32
    %45 = vector.broadcast %c0_i32_17 : i32 to vector<32x1xi32>
    %46 = arith.cmpi slt, %42, %45 : vector<32x1xi32>
    %c0_i32_18 = arith.constant 0 : i32
    %47 = arith.cmpi slt, %40, %c0_i32_18 : i32
    %48 = vector.broadcast %47 : i1 to vector<32x1xi1>
    %49 = vector.broadcast %48 : vector<32x1xi1> to vector<32x1xi1>
    %50 = arith.xori %46, %49 : vector<32x1xi1>
    %51 = arith.andi %50, %44 : vector<32x1xi1>
    %52 = vector.broadcast %40 : i32 to vector<32x1xi32>
    %53 = arith.addi %42, %52 : vector<32x1xi32>
    %54 = arith.select %51, %53, %42 : vector<32x1xi1>, vector<32x1xi32>
    %c15_i32 = arith.constant 15 : i32
    %55 = vector.broadcast %c15_i32 : i32 to vector<32x1xi32>
    %56 = arith.cmpi eq, %54, %55 : vector<32x1xi32>
    %c0_19 = arith.constant 0 : index
    %c0_20 = arith.constant 0 : index
    %57 = vector.load %arg3[%c0_19, %c0_20] : memref<64x256xbf16, #tpu.memory_space<vmem>>, vector<64x256xbf16>
    %cst = arith.constant dense<0.000000e+00> : vector<32x256xf32>
    %58 = tpu.matmul %0, %57, %cst {dimension_numbers = #tpu.dot_dimension_numbers<[1], [0], [0], [1], [0, 0, 1, 1], [], []>} : vector<32x64xbf16>, vector<64x256xbf16>, vector<32x256xf32> -> vector<32x256xf32>
    %59 = vector.extract_strided_slice %58 {offsets = [0, 128], sizes = [32, 128], strides = [1, 1]} : vector<32x256xf32> to vector<32x128xf32>
    %60 = vector.extract_strided_slice %58 {offsets = [0, 0], sizes = [32, 128], strides = [1, 1]} : vector<32x256xf32> to vector<32x128xf32>
    %61 = vector.shape_cast %20 : vector<32x1xi1> to vector<32x1xi1>
    %62 = vector.broadcast %61 : vector<32x1xi1> to vector<32x128xi1>
    %63 = arith.select %62, %59, %60 : vector<32x128xi1>, vector<32x128xf32>
    %c0_21 = arith.constant 0 : index
    %c0_22 = arith.constant 0 : index
    %64 = vector.load %arg7[%c0_21, %c0_22] : memref<1x128xf32, #tpu.memory_space<vmem>>, vector<1x128xf32>
    %65 = vector.broadcast %64 : vector<1x128xf32> to vector<32x128xf32>
    %66 = arith.addf %63, %65 : vector<32x128xf32>
    %67 = arith.truncf %66 : vector<32x128xf32> to vector<32x128xbf16>
    %c0_23 = arith.constant 0 : index
    %c0_24 = arith.constant 0 : index
    %c0_25 = arith.constant 0 : index
    %68 = vector.load %arg4[%c0_23, %c0_24, %c0_25] : memref<3x128x128xbf16, #tpu.memory_space<vmem>>, vector<1x128x128xbf16>
    %69 = vector.shape_cast %68 : vector<1x128x128xbf16> to vector<128x128xbf16>
    %cst_26 = arith.constant dense<0.000000e+00> : vector<32x128xf32>
    %70 = tpu.matmul %67, %69, %cst_26 {dimension_numbers = #tpu.dot_dimension_numbers<[1], [0], [0], [1], [0, 0, 1, 1], [], []>} : vector<32x128xbf16>, vector<128x128xbf16>, vector<32x128xf32> -> vector<32x128xf32>
    %c0_27 = arith.constant 0 : index
    %c0_28 = arith.constant 0 : index
    %c0_29 = arith.constant 0 : index
    %71 = vector.load %arg5[%c0_27, %c0_28, %c0_29] : memref<3x64x128xbf16, #tpu.memory_space<vmem>>, vector<1x64x128xbf16>
    %72 = vector.shape_cast %71 : vector<1x64x128xbf16> to vector<64x128xbf16>
    %cst_30 = arith.constant dense<0.000000e+00> : vector<32x128xf32>
    %73 = tpu.matmul %1, %72, %cst_30 {dimension_numbers = #tpu.dot_dimension_numbers<[1], [0], [0], [1], [0, 0, 1, 1], [], []>} : vector<32x64xbf16>, vector<64x128xbf16>, vector<32x128xf32> -> vector<32x128xf32>
    %74 = arith.addf %70, %73 : vector<32x128xf32>
    %c1 = arith.constant 1 : index
    %c0_31 = arith.constant 0 : index
    %c0_32 = arith.constant 0 : index
    %75 = vector.load %arg4[%c1, %c0_31, %c0_32] : memref<3x128x128xbf16, #tpu.memory_space<vmem>>, vector<1x128x128xbf16>
    %76 = vector.shape_cast %75 : vector<1x128x128xbf16> to vector<128x128xbf16>
    %cst_33 = arith.constant dense<0.000000e+00> : vector<32x128xf32>
    %77 = tpu.matmul %67, %76, %cst_33 {dimension_numbers = #tpu.dot_dimension_numbers<[1], [0], [0], [1], [0, 0, 1, 1], [], []>} : vector<32x128xbf16>, vector<128x128xbf16>, vector<32x128xf32> -> vector<32x128xf32>
    %c1_34 = arith.constant 1 : index
    %c0_35 = arith.constant 0 : index
    %c0_36 = arith.constant 0 : index
    %78 = vector.load %arg5[%c1_34, %c0_35, %c0_36] : memref<3x64x128xbf16, #tpu.memory_space<vmem>>, vector<1x64x128xbf16>
    %79 = vector.shape_cast %78 : vector<1x64x128xbf16> to vector<64x128xbf16>
    %cst_37 = arith.constant dense<0.000000e+00> : vector<32x128xf32>
    %80 = tpu.matmul %1, %79, %cst_37 {dimension_numbers = #tpu.dot_dimension_numbers<[1], [0], [0], [1], [0, 0, 1, 1], [], []>} : vector<32x64xbf16>, vector<64x128xbf16>, vector<32x128xf32> -> vector<32x128xf32>
    %81 = arith.addf %77, %80 : vector<32x128xf32>
    %c2 = arith.constant 2 : index
    %c0_38 = arith.constant 0 : index
    %c0_39 = arith.constant 0 : index
    %82 = vector.load %arg4[%c2, %c0_38, %c0_39] : memref<3x128x128xbf16, #tpu.memory_space<vmem>>, vector<1x128x128xbf16>
    %83 = vector.shape_cast %82 : vector<1x128x128xbf16> to vector<128x128xbf16>
    %cst_40 = arith.constant dense<0.000000e+00> : vector<32x128xf32>
    %84 = tpu.matmul %67, %83, %cst_40 {dimension_numbers = #tpu.dot_dimension_numbers<[1], [0], [0], [1], [0, 0, 1, 1], [], []>} : vector<32x128xbf16>, vector<128x128xbf16>, vector<32x128xf32> -> vector<32x128xf32>
    %c2_41 = arith.constant 2 : index
    %c0_42 = arith.constant 0 : index
    %c0_43 = arith.constant 0 : index
    %85 = vector.load %arg5[%c2_41, %c0_42, %c0_43] : memref<3x64x128xbf16, #tpu.memory_space<vmem>>, vector<1x64x128xbf16>
    %86 = vector.shape_cast %85 : vector<1x64x128xbf16> to vector<64x128xbf16>
    %cst_44 = arith.constant dense<0.000000e+00> : vector<32x128xf32>
    %87 = tpu.matmul %1, %86, %cst_44 {dimension_numbers = #tpu.dot_dimension_numbers<[1], [0], [0], [1], [0, 0, 1, 1], [], []>} : vector<32x64xbf16>, vector<64x128xbf16>, vector<32x128xf32> -> vector<32x128xf32>
    %88 = arith.addf %84, %87 : vector<32x128xf32>
    %89 = vector.extract_strided_slice %74 {offsets = [31, 0], sizes = [1, 128], strides = [1, 1]} : vector<32x128xf32> to vector<1x128xf32>
    %90 = vector.extract_strided_slice %74 {offsets = [0, 0], sizes = [31, 128], strides = [1, 1]} : vector<32x128xf32> to vector<31x128xf32>
    %91 = tpu.concatenate %89, %90 in 0 : vector<1x128xf32>, vector<31x128xf32> -> vector<32x128xf32>
    %cst_45 = arith.constant 0.000000e+00 : f32
    %92 = vector.shape_cast %38 : vector<32x1xi1> to vector<32x1xi1>
    %93 = vector.broadcast %92 : vector<32x1xi1> to vector<32x128xi1>
    %94 = vector.broadcast %cst_45 : f32 to vector<32x128xf32>
    %95 = arith.select %93, %94, %91 : vector<32x128xi1>, vector<32x128xf32>
    %96 = arith.addf %81, %95 : vector<32x128xf32>
    %97 = vector.extract_strided_slice %88 {offsets = [1, 0], sizes = [31, 128], strides = [1, 1]} : vector<32x128xf32> to vector<31x128xf32>
    %98 = vector.extract_strided_slice %88 {offsets = [0, 0], sizes = [1, 128], strides = [1, 1]} : vector<32x128xf32> to vector<1x128xf32>
    %99 = tpu.concatenate %97, %98 in 0 : vector<31x128xf32>, vector<1x128xf32> -> vector<32x128xf32>
    %cst_46 = arith.constant 0.000000e+00 : f32
    %100 = vector.shape_cast %56 : vector<32x1xi1> to vector<32x1xi1>
    %101 = vector.broadcast %100 : vector<32x1xi1> to vector<32x128xi1>
    %102 = vector.broadcast %cst_46 : f32 to vector<32x128xf32>
    %103 = arith.select %101, %102, %99 : vector<32x128xi1>, vector<32x128xf32>
    %104 = arith.addf %96, %103 : vector<32x128xf32>
    %c0_47 = arith.constant 0 : index
    %c0_48 = arith.constant 0 : index
    %105 = vector.load %arg8[%c0_47, %c0_48] : memref<1x128xf32, #tpu.memory_space<vmem>>, vector<1x128xf32>
    %106 = vector.broadcast %105 : vector<1x128xf32> to vector<32x128xf32>
    %107 = arith.addf %104, %106 : vector<32x128xf32>
    %cst_49 = arith.constant 0.000000e+00 : f32
    %108 = vector.broadcast %cst_49 : f32 to vector<32x128xf32>
    %109 = arith.maximumf %107, %108 : vector<32x128xf32>
    %110 = arith.truncf %109 : vector<32x128xf32> to vector<32x128xbf16>
    %c0_50 = arith.constant 0 : index
    %c0_51 = arith.constant 0 : index
    %c0_52 = arith.constant 0 : index
    %111 = vector.load %arg6[%c0_50, %c0_51, %c0_52] : memref<3x128x128xbf16, #tpu.memory_space<vmem>>, vector<1x128x128xbf16>
    %112 = vector.shape_cast %111 : vector<1x128x128xbf16> to vector<128x128xbf16>
    %cst_53 = arith.constant dense<0.000000e+00> : vector<32x128xf32>
    %113 = tpu.matmul %110, %112, %cst_53 {dimension_numbers = #tpu.dot_dimension_numbers<[1], [0], [0], [1], [0, 0, 1, 1], [], []>} : vector<32x128xbf16>, vector<128x128xbf16>, vector<32x128xf32> -> vector<32x128xf32>
    %c1_54 = arith.constant 1 : index
    %c0_55 = arith.constant 0 : index
    %c0_56 = arith.constant 0 : index
    %114 = vector.load %arg6[%c1_54, %c0_55, %c0_56] : memref<3x128x128xbf16, #tpu.memory_space<vmem>>, vector<1x128x128xbf16>
    %115 = vector.shape_cast %114 : vector<1x128x128xbf16> to vector<128x128xbf16>
    %cst_57 = arith.constant dense<0.000000e+00> : vector<32x128xf32>
    %116 = tpu.matmul %110, %115, %cst_57 {dimension_numbers = #tpu.dot_dimension_numbers<[1], [0], [0], [1], [0, 0, 1, 1], [], []>} : vector<32x128xbf16>, vector<128x128xbf16>, vector<32x128xf32> -> vector<32x128xf32>
    %c2_58 = arith.constant 2 : index
    %c0_59 = arith.constant 0 : index
    %c0_60 = arith.constant 0 : index
    %117 = vector.load %arg6[%c2_58, %c0_59, %c0_60] : memref<3x128x128xbf16, #tpu.memory_space<vmem>>, vector<1x128x128xbf16>
    %118 = vector.shape_cast %117 : vector<1x128x128xbf16> to vector<128x128xbf16>
    %cst_61 = arith.constant dense<0.000000e+00> : vector<32x128xf32>
    %119 = tpu.matmul %110, %118, %cst_61 {dimension_numbers = #tpu.dot_dimension_numbers<[1], [0], [0], [1], [0, 0, 1, 1], [], []>} : vector<32x128xbf16>, vector<128x128xbf16>, vector<32x128xf32> -> vector<32x128xf32>
    %120 = vector.extract_strided_slice %113 {offsets = [31, 0], sizes = [1, 128], strides = [1, 1]} : vector<32x128xf32> to vector<1x128xf32>
    %121 = vector.extract_strided_slice %113 {offsets = [0, 0], sizes = [31, 128], strides = [1, 1]} : vector<32x128xf32> to vector<31x128xf32>
    %122 = tpu.concatenate %120, %121 in 0 : vector<1x128xf32>, vector<31x128xf32> -> vector<32x128xf32>
    %cst_62 = arith.constant 0.000000e+00 : f32
    %123 = vector.shape_cast %38 : vector<32x1xi1> to vector<32x1xi1>
    %124 = vector.broadcast %123 : vector<32x1xi1> to vector<32x128xi1>
    %125 = vector.broadcast %cst_62 : f32 to vector<32x128xf32>
    %126 = arith.select %124, %125, %122 : vector<32x128xi1>, vector<32x128xf32>
    %127 = arith.addf %116, %126 : vector<32x128xf32>
    %128 = vector.extract_strided_slice %119 {offsets = [1, 0], sizes = [31, 128], strides = [1, 1]} : vector<32x128xf32> to vector<31x128xf32>
    %129 = vector.extract_strided_slice %119 {offsets = [0, 0], sizes = [1, 128], strides = [1, 1]} : vector<32x128xf32> to vector<1x128xf32>
    %130 = tpu.concatenate %128, %129 in 0 : vector<31x128xf32>, vector<1x128xf32> -> vector<32x128xf32>
    %cst_63 = arith.constant 0.000000e+00 : f32
    %131 = vector.shape_cast %56 : vector<32x1xi1> to vector<32x1xi1>
    %132 = vector.broadcast %131 : vector<32x1xi1> to vector<32x128xi1>
    %133 = vector.broadcast %cst_63 : f32 to vector<32x128xf32>
    %134 = arith.select %132, %133, %130 : vector<32x128xi1>, vector<32x128xf32>
    %135 = arith.addf %127, %134 : vector<32x128xf32>
    %c0_64 = arith.constant 0 : index
    %c0_65 = arith.constant 0 : index
    %136 = vector.load %arg9[%c0_64, %c0_65] : memref<1x128xf32, #tpu.memory_space<vmem>>, vector<1x128xf32>
    %137 = vector.broadcast %136 : vector<1x128xf32> to vector<32x128xf32>
    %138 = arith.addf %135, %137 : vector<32x128xf32>
    %cst_66 = arith.constant 0.000000e+00 : f32
    %139 = vector.broadcast %cst_66 : f32 to vector<32x128xf32>
    %140 = arith.maximumf %138, %139 : vector<32x128xf32>
    %141 = arith.truncf %140 : vector<32x128xf32> to vector<32x128xbf16>
    %c0_67 = arith.constant 0 : index
    %c0_68 = arith.constant 0 : index
    %142 = vector.load %arg10[%c0_67, %c0_68] : memref<32x128xbf16, #tpu.memory_space<vmem>>, vector<32x128xbf16>
    tpu.vector_store %arg10[%c0_67, %c0_68], %141 {strides = array<i32>} : memref<32x128xbf16, #tpu.memory_space<vmem>>, vector<32x128xbf16>,
    return
  }
  func.func @transform_0(%arg0: i32) -> (i32, i32) {
    %c0_i32 = arith.constant 0 : i32
    %c0_i32_0 = arith.constant 0 : i32
    return %arg0, %c0_i32 : i32, i32
  }
  func.func @transform_1(%arg0: i32) -> (i32, i32) {
    %c0_i32 = arith.constant 0 : i32
    %c0_i32_0 = arith.constant 0 : i32
    return %arg0, %c0_i32 : i32, i32
  }
  func.func @transform_2(%arg0: i32) -> (i32, i32) {
    %c0_i32 = arith.constant 0 : i32
    %c0_i32_0 = arith.constant 0 : i32
    %c0_i32_1 = arith.constant 0 : i32
    return %c0_i32, %c0_i32_0 : i32, i32
  }
  func.func @transform_3(%arg0: i32) -> (i32, i32, i32) {
    %c0_i32 = arith.constant 0 : i32
    %c0_i32_0 = arith.constant 0 : i32
    %c0_i32_1 = arith.constant 0 : i32
    %c0_i32_2 = arith.constant 0 : i32
    return %c0_i32, %c0_i32_0, %c0_i32_1 : i32, i32, i32
  }
  func.func @transform_4(%arg0: i32) -> (i32, i32, i32) {
    %c0_i32 = arith.constant 0 : i32
    %c0_i32_0 = arith.constant 0 : i32
    %c0_i32_1 = arith.constant 0 : i32
    %c0_i32_2 = arith.constant 0 : i32
    return %c0_i32, %c0_i32_0, %c0_i32_1 : i32, i32, i32
  }
  func.func @transform_5(%arg0: i32) -> (i32, i32, i32) {
    %c0_i32 = arith.constant 0 : i32
    %c0_i32_0 = arith.constant 0 : i32
    %c0_i32_1 = arith.constant 0 : i32
    %c0_i32_2 = arith.constant 0 : i32
    return %c0_i32, %c0_i32_0, %c0_i32_1 : i32, i32, i32
  }
  func.func @transform_6(%arg0: i32) -> (i32, i32) {
    %c0_i32 = arith.constant 0 : i32
    %c0_i32_0 = arith.constant 0 : i32
    %c0_i32_1 = arith.constant 0 : i32
    return %c0_i32, %c0_i32_0 : i32, i32
  }
  func.func @transform_7(%arg0: i32) -> (i32, i32) {
    %c0_i32 = arith.constant 0 : i32
    %c0_i32_0 = arith.constant 0 : i32
    %c0_i32_1 = arith.constant 0 : i32
    return %c0_i32, %c0_i32_0 : i32, i32
  }
  func.func @transform_8(%arg0: i32) -> (i32, i32) {
    %c0_i32 = arith.constant 0 : i32
    %c0_i32_0 = arith.constant 0 : i32
    %c0_i32_1 = arith.constant 0 : i32
    return %c0_i32, %c0_i32_0 : i32, i32
  }
  func.func @transform_9(%arg0: i32) -> (i32, i32) {
    %c0_i32 = arith.constant 0 : i32
    %c0_i32_0 = arith.constant 0 : i32
    return %arg0, %c0_i32 : i32, i32
  }
}

</mosaic_0001>

<llo_original>
// kernel: decode_forward.1
$region0: #{decode_forward.1}
  #allocation0 [shape = 'u32[]', space=smem, size = 0x4, offset = 0x4, fixed_abs, tag = 'smem constant byte address 0x4 - core index']
  #allocation1 [shape = 'u32[144,128]{1,0:T(1,128)}', space=vmem, size = 0x12000, scoped, tag = 'internal scratch']
  %s0 = inlined_call_operand.vmem [shape: bf16[32,64], index: 0, kind: input, shape index: {}]
  %s1 = inlined_call_operand.vmem [shape: bf16[32,64], index: 1, kind: input, shape index: {}]
  %s2 = inlined_call_operand.vmem [shape: bf16[64,256], index: 2, kind: input, shape index: {}]
  %s3 = inlined_call_operand.vmem [shape: bf16[3,128,128], index: 3, kind: input, shape index: {}]
  %s4 = inlined_call_operand.vmem [shape: bf16[3,64,128], index: 4, kind: input, shape index: {}]
  %s5 = inlined_call_operand.vmem [shape: bf16[3,128,128], index: 5, kind: input, shape index: {}]
  %s6 = inlined_call_operand.vmem [shape: f32[1,128], index: 6, kind: input, shape index: {}]
  %s7 = inlined_call_operand.vmem [shape: f32[1,128], index: 7, kind: input, shape index: {}]
  %s8 = inlined_call_operand.vmem [shape: f32[1,128], index: 8, kind: input, shape index: {}]
  %s9 = inlined_call_operand.vmem [shape: bf16[32,128], index: 9, kind: output, shape index: {}]
  %s10 = sld [smem:[#allocation0]]
  $region46: #{decode_forward.1} parent=0
    _
  %s12 = ssub.s32 1, %s10
  %s13 = scalar_select 0, %s12, %s10
  // Predicated region
  $region2: #{decode_forward.1} parent=0 // pred_check
    _
  $region3: #{decode_forward.1} parent=0 // pred_check_branch
    %15 = sbr.rel (0) target = $region5
  $region4: #{decode_forward.1} parent=0 // pred_region
    _
  $region5: #{decode_forward.1} parent=0 // pred_fallthru
    _
  // Predicated region
  $region6: #{decode_forward.1} parent=0 // pred_check
    _
  $region7: #{decode_forward.1} parent=0 // pred_check_branch
    %17 = sbr.rel (0) target = $region9
  $region8: #{decode_forward.1} parent=0 // pred_region
    _
  $region9: #{decode_forward.1} parent=0 // pred_fallthru
    _
  // Predicated region
  $region10: #{decode_forward.1} parent=0 // pred_check
    _
  $region11: #{decode_forward.1} parent=0 // pred_check_branch
    %19 = sbr.rel (0) target = $region13
  $region12: #{decode_forward.1} parent=0 // pred_region
    _
  $region13: #{decode_forward.1} parent=0 // pred_fallthru
    _
  // Predicated region
  $region14: #{decode_forward.1} parent=0 // pred_check
    _
  $region15: #{decode_forward.1} parent=0 // pred_check_branch
    %21 = sbr.rel (0) target = $region17
  $region16: #{decode_forward.1} parent=0 // pred_region
    _
  $region17: #{decode_forward.1} parent=0 // pred_fallthru
    _
  // Predicated region
  $region18: #{decode_forward.1} parent=0 // pred_check
    _
  $region19: #{decode_forward.1} parent=0 // pred_check_branch
    %23 = sbr.rel (0) target = $region21
  $region20: #{decode_forward.1} parent=0 // pred_region
    _
  $region21: #{decode_forward.1} parent=0 // pred_fallthru
    _
  // Predicated region
  $region22: #{decode_forward.1} parent=0 // pred_check
    _
  $region23: #{decode_forward.1} parent=0 // pred_check_branch
    %25 = sbr.rel (0) target = $region25
  $region24: #{decode_forward.1} parent=0 // pred_region
    _
  $region25: #{decode_forward.1} parent=0 // pred_fallthru
    _
  // Predicated region
  $region26: #{decode_forward.1} parent=0 // pred_check
    _
  $region27: #{decode_forward.1} parent=0 // pred_check_branch
    %27 = sbr.rel (0) target = $region29
  $region28: #{decode_forward.1} parent=0 // pred_region
    _
  $region29: #{decode_forward.1} parent=0 // pred_fallthru
    _
  // Predicated region
  $region30: #{decode_forward.1} parent=0 // pred_check
    _
  $region31: #{decode_forward.1} parent=0 // pred_check_branch
    %29 = sbr.rel (0) target = $region33
  $region32: #{decode_forward.1} parent=0 // pred_region
    _
  $region33: #{decode_forward.1} parent=0 // pred_fallthru
    _
  // Predicated region
  $region34: #{decode_forward.1} parent=0 // pred_check
    _
  $region35: #{decode_forward.1} parent=0 // pred_check_branch
    %31 = sbr.rel (0) target = $region37
  $region36: #{decode_forward.1} parent=0 // pred_region
    _
  $region37: #{decode_forward.1} parent=0 // pred_fallthru
    _
  %v33 = vld [vmem:[%s0] sm:$0xf]
  %v34 = vld [vmem:[%s0 + $0x4] sm:$0xf]
  %v35 = vld [vmem:[%s0 + $0x8] sm:$0xf]
  %v36 = vld [vmem:[%s0 + $0xc] sm:$0xf]
  %v37 = vld [vmem:[%s1] sm:$0xf]
  %v38 = vld [vmem:[%s1 + $0x4] sm:$0xf]
  %v39 = vld [vmem:[%s1 + $0x8] sm:$0xf]
  %v40 = vld [vmem:[%s1 + $0xc] sm:$0xf]
  %v41 = vlaneseq
  %v42 = vshrl.u32 %v41, 7
  %v43 = vadd.s32 %v42, 8
  %v44 = vadd.s32 %v42, 16
  %v45 = vadd.s32 %v42, 24
  %vm46 = vcmp.lt.s32.totalorder %v42, 0
  %v47 = vsub.s32 0, %v42
  %v48 = vsel %vm46, %v47, %v42
  %v49 = vshrl.u32 %v48, 1
  %v50 = vand.u32 %v48, 1
  %v51 = vsub.s32 0, %v50
  %v52 = vsel %vm46, %v51, %v50
  %vm53 = vcmp.lt.s32.totalorder %v43, 0
  %v54 = vsub.s32 0, %v43
  %v55 = vsel %vm53, %v54, %v43
  %v56 = vshrl.u32 %v55, 1
  %v57 = vand.u32 %v55, 1
  %v58 = vsub.s32 0, %v57
  %v59 = vsel %vm53, %v58, %v57
  %vm60 = vcmp.lt.s32.totalorder %v44, 0
  %v61 = vsub.s32 0, %v44
  %v62 = vsel %vm60, %v61, %v44
  %v63 = vshrl.u32 %v62, 1
  %v64 = vand.u32 %v62, 1
  %v65 = vsub.s32 0, %v64
  %v66 = vsel %vm60, %v65, %v64
  %vm67 = vcmp.lt.s32.totalorder %v45, 0
  %v68 = vsub.s32 0, %v45
  %v69 = vsel %vm67, %v68, %v45
  %v70 = vshrl.u32 %v69, 1
  %v71 = vand.u32 %v69, 1
  %v72 = vsub.s32 0, %v71
  %v73 = vsel %vm67, %v72, %v71
  %vm74 = vcmp.ne.s32.totalorder %v52, 0
  %vm75 = vcmp.ne.s32.totalorder %v59, 0
  %vm76 = vcmp.ne.s32.totalorder %v66, 0
  %vm77 = vcmp.ne.s32.totalorder %v73, 0
  %vm78 = vcmp.lt.s32.totalorder %v52, 0
  %vm79 = vcmp.lt.s32.totalorder %v59, 0
  %vm80 = vcmp.lt.s32.totalorder %v66, 0
  %vm81 = vcmp.lt.s32.totalorder %v73, 0
  %vm82 = vmand %vm78, %vm74
  %vm83 = vmand %vm79, %vm75
  %vm84 = vmand %vm80, %vm76
  %vm85 = vmand %vm81, %vm77
  %v86 = vadd.s32 %v52, 2
  %v87 = vadd.s32 %v59, 2
  %v88 = vadd.s32 %v66, 2
  %v89 = vadd.s32 %v73, 2
  %v90 = vsel %vm82, %v86, %v52
  %v91 = vsel %vm83, %v87, %v59
  %v92 = vsel %vm84, %v88, %v66
  %v93 = vsel %vm85, %v89, %v73
  %vm94 = vcmp.eq.s32.totalorder %v90, 1
  %vm95 = vcmp.eq.s32.totalorder %v91, 1
  %vm96 = vcmp.eq.s32.totalorder %v92, 1
  %vm97 = vcmp.eq.s32.totalorder %v93, 1
  %vm98 = vcmp.lt.s32.totalorder %v42, 0
  %v99 = vsub.s32 0, %v42
  %v100 = vsel %vm98, %v99, %v42
  %v101 = vshrl.u32 %v100, 4
  %v102 = vand.u32 %v100, 15
  %v103 = vsub.s32 0, %v102
  %v104 = vsel %vm98, %v103, %v102
  %vm105 = vcmp.lt.s32.totalorder %v43, 0
  %v106 = vsub.s32 0, %v43
  %v107 = vsel %vm105, %v106, %v43
  %v108 = vshrl.u32 %v107, 4
  %v109 = vand.u32 %v107, 15
  %v110 = vsub.s32 0, %v109
  %v111 = vsel %vm105, %v110, %v109
  %vm112 = vcmp.lt.s32.totalorder %v44, 0
  %v113 = vsub.s32 0, %v44
  %v114 = vsel %vm112, %v113, %v44
  %v115 = vshrl.u32 %v114, 4
  %v116 = vand.u32 %v114, 15
  %v117 = vsub.s32 0, %v116
  %v118 = vsel %vm112, %v117, %v116
  %vm119 = vcmp.lt.s32.totalorder %v45, 0
  %v120 = vsub.s32 0, %v45
  %v121 = vsel %vm119, %v120, %v45
  %v122 = vshrl.u32 %v121, 4
  %v123 = vand.u32 %v121, 15
  %v124 = vsub.s32 0, %v123
  %v125 = vsel %vm119, %v124, %v123
  %vm126 = vcmp.ne.s32.totalorder %v104, 0
  %vm127 = vcmp.ne.s32.totalorder %v111, 0
  %vm128 = vcmp.ne.s32.totalorder %v118, 0
  %vm129 = vcmp.ne.s32.totalorder %v125, 0
  %vm130 = vcmp.lt.s32.totalorder %v104, 0
  %vm131 = vcmp.lt.s32.totalorder %v111, 0
  %vm132 = vcmp.lt.s32.totalorder %v118, 0
  %vm133 = vcmp.lt.s32.totalorder %v125, 0
  %vm134 = vmand %vm130, %vm126
  %vm135 = vmand %vm131, %vm127
  %vm136 = vmand %vm132, %vm128
  %vm137 = vmand %vm133, %vm129
  %v138 = vadd.s32 %v104, 16
  %v139 = vadd.s32 %v111, 16
  %v140 = vadd.s32 %v118, 16
  %v141 = vadd.s32 %v125, 16
  %v142 = vsel %vm134, %v138, %v104
  %v143 = vsel %vm135, %v139, %v111
  %v144 = vsel %vm136, %v140, %v118
  %v145 = vsel %vm137, %v141, %v125
  %vm146 = vcmp.eq.s32.totalorder %v142, 0
  %vm147 = vcmp.eq.s32.totalorder %v143, 0
  %vm148 = vcmp.eq.s32.totalorder %v144, 0
  %vm149 = vcmp.eq.s32.totalorder %v145, 0
  %vm150 = vcmp.eq.s32.totalorder %v142, 15
  %vm151 = vcmp.eq.s32.totalorder %v143, 15
  %vm152 = vcmp.eq.s32.totalorder %v144, 15
  %vm153 = vcmp.eq.s32.totalorder %v145, 15
  %v154 = vld [vmem:[%s2] sm:$0xff]
  %v155 = vld [vmem:[%s2 + $0x8] sm:$0xff]
  %v156 = vld [vmem:[%s2 + $0x10] sm:$0xff]
  %v157 = vld [vmem:[%s2 + $0x18] sm:$0xff]
  %v158 = vld [vmem:[%s2 + $0x20] sm:$0xff]
  %v159 = vld [vmem:[%s2 + $0x28] sm:$0xff]
  %v160 = vld [vmem:[%s2 + $0x30] sm:$0xff]
  %v161 = vld [vmem:[%s2 + $0x38] sm:$0xff]
  %v166 = vunpack.c.l.b16 %v33
  %v167 = vunpack.c.l.b16 %v34
  %v168 = vunpack.c.l.b16 %v35
  %v169 = vunpack.c.l.b16 %v36
  %v170 = vpack.c.b16 %v167, %v166
  %v171 = vpack.c.b16 %v169, %v168
  %v180 = vunpack.c.l.b16 %v154
  %v181 = vunpack.c.h.b16 %v154
  %v182 = vunpack.c.l.b16 %v155
  %v183 = vunpack.c.h.b16 %v155
  %v184 = vunpack.c.l.b16 %v156
  %v185 = vunpack.c.h.b16 %v156
  %v186 = vunpack.c.l.b16 %v157
  %v187 = vunpack.c.h.b16 %v157
  %v188 = vunpack.c.l.b16 %v158
  %v189 = vunpack.c.h.b16 %v158
  %v190 = vunpack.c.l.b16 %v159
  %v191 = vunpack.c.h.b16 %v159
  %v192 = vunpack.c.l.b16 %v160
  %v193 = vunpack.c.h.b16 %v160
  %v194 = vunpack.c.l.b16 %v161
  %v195 = vunpack.c.h.b16 %v161
  %v196 = vpack.c.b16 %v182, %v180
  %v197 = vpack.c.b16 %v183, %v181
  %v198 = vpack.c.b16 %v186, %v184
  %v199 = vpack.c.b16 %v187, %v185
  %v200 = vpack.c.b16 %v190, %v188
  %v201 = vpack.c.b16 %v191, %v189
  %v202 = vpack.c.b16 %v194, %v192
  %v203 = vpack.c.b16 %v195, %v193
  %vm212 = vcmask 523264
  %v214 = vsel %vm212, %v170, 0
  %v217 = vsel %vm212, %v171, 0
  %219 = vmatprep.subr.bf16.mxu0 %v197
  %220 = vmatpush1.bf16.msra.mxu0 %v196
  %221 = vmatprep.subr.bf16.mxu0 %v199
  %222 = vmatpush1.bf16.msra.mxu0 %v198
  %223 = vmatprep.subr.bf16.mxu0 %v201
  %224 = vmatpush1.bf16.msra.mxu0 %v200
  %225 = vmatprep.subr.bf16.mxu0 %v203
  %226 = vmatpush1.bf16.msra.mxu0 %v202
  %227 = vmatprep.subr.bf16.mxu0 0
  %228 = vmatpush1.bf16.msra.mxu0 0
  %229 = vmatprep.subr.bf16.mxu0 0
  %230 = vmatpush1.bf16.msra.mxu0 0
  %231 = vmatprep.subr.bf16.mxu0 0
  %232 = vmatpush1.bf16.msra.mxu0 0
  %233 = vmatprep.subr.bf16.mxu0 0
  %234 = vmatpush1.bf16.msra.mxu0 0
  %235 = vmatprep.subr.bf16.mxu0 0
  %236 = vmatpush1.bf16.msra.mxu0 0
  %237 = vmatprep.subr.bf16.mxu0 0
  %238 = vmatpush1.bf16.msra.mxu0 0
  %239 = vmatprep.subr.bf16.mxu0 0
  %240 = vmatpush1.bf16.msra.mxu0 0
  %241 = vmatprep.subr.bf16.mxu0 0
  %242 = vmatpush1.bf16.msra.mxu0 0
  %243 = vmatprep.subr.bf16.mxu0 0
  %244 = vmatpush1.bf16.msra.mxu0 0
  %245 = vmatprep.subr.bf16.mxu0 0
  %246 = vmatpush1.bf16.msra.mxu0 0
  %247 = vmatprep.subr.bf16.mxu0 0
  %248 = vmatpush1.bf16.msra.mxu0 0
  %249 = vmatprep.subr.bf16.mxu0 0
  %250 = vmatpush1.bf16.msra.mxu0 0
  %251 = vmatprep.mubr.bf16.mxu0 0
  %252 = vmatmul.mubr.bf16.gmra.mrb[0].mxu0 %v214
  %v253 = vpop.f32.mrb[0].mxu0
  %v254 = vadd.f32 0.0, %v253
  %v255 = vpop.f32.mrb[0].mxu0
  %v256 = vadd.f32 0.0, %v255
  %v257 = vpop.f32.mrb[0].mxu0
  %v258 = vadd.f32 0.0, %v257
  %v259 = vpop.f32.mrb[0].mxu0
  %v260 = vadd.f32 0.0, %v259
  %261 = vmatprep.mubr.bf16.mxu0 0
  %262 = vmatmul.mubr.bf16.gmra.mrb[0].mxu0 %v217
  %v263 = vpop.f32.mrb[0].mxu0
  %v264 = vadd.f32 0.0, %v263
  %v265 = vpop.f32.mrb[0].mxu0
  %v266 = vadd.f32 0.0, %v265
  %v267 = vpop.f32.mrb[0].mxu0
  %v268 = vadd.f32 0.0, %v267
  %v269 = vpop.f32.mrb[0].mxu0
  %v270 = vadd.f32 0.0, %v269
  %271 = vdwg.mxu0
  %v272 = vsel %vm94, 1, 0
  %v273 = vsel %vm95, 1, 0
  %v274 = vsel %vm96, 1, 0
  %v275 = vsel %vm97, 1, 0
  %vm276 = vcmp.eq.s32.totalorder %v272, 1
  %vm277 = vcmp.eq.s32.totalorder %v273, 1
  %vm278 = vcmp.eq.s32.totalorder %v274, 1
  %vm279 = vcmp.eq.s32.totalorder %v275, 1
  %v280 = vsel %vm276, %v256, %v254
  %v281 = vsel %vm277, %v260, %v258
  %v282 = vsel %vm278, %v266, %v264
  %v283 = vsel %vm279, %v270, %v268
  %v284 = vld [vmem:[%s6] sm:$0x1]
  %v286 = vlaneseq
  %v287 = vshrl.u32 %v286, 7
  %v288 = vsub.s32 0, %v287
  %v289 = vrot.slane %v284, %v288
  %v291 = vadd.f32 %v280, %v289
  %v292 = vadd.f32 %v281, %v289
  %v293 = vadd.f32 %v282, %v289
  %v294 = vadd.f32 %v283, %v289
  %v295 = vpack.c.bf16 %v292, %v291
  %v296 = vpack.c.bf16 %v294, %v293
  %v297 = vld [vmem:[%s3] sm:$0xf]
  %v298 = vld [vmem:[%s3 + $0x4] sm:$0xf]
  %v299 = vld [vmem:[%s3 + $0x8] sm:$0xf]
  %v300 = vld [vmem:[%s3 + $0xc] sm:$0xf]
  %v301 = vld [vmem:[%s3 + $0x10] sm:$0xf]
  %v302 = vld [vmem:[%s3 + $0x14] sm:$0xf]
  %v303 = vld [vmem:[%s3 + $0x18] sm:$0xf]
  %v304 = vld [vmem:[%s3 + $0x1c] sm:$0xf]
  %v305 = vld [vmem:[%s3 + $0x20] sm:$0xf]
  %v306 = vld [vmem:[%s3 + $0x24] sm:$0xf]
  %v307 = vld [vmem:[%s3 + $0x28] sm:$0xf]
  %v308 = vld [vmem:[%s3 + $0x2c] sm:$0xf]
  %v309 = vld [vmem:[%s3 + $0x30] sm:$0xf]
  %v310 = vld [vmem:[%s3 + $0x34] sm:$0xf]
  %v311 = vld [vmem:[%s3 + $0x38] sm:$0xf]
  %v312 = vld [vmem:[%s3 + $0x3c] sm:$0xf]
  %v313 = vld [vmem:[%s4] sm:$0xf]
  %v314 = vld [vmem:[%s4 + $0x4] sm:$0xf]
  %v315 = vld [vmem:[%s4 + $0x8] sm:$0xf]
  %v316 = vld [vmem:[%s4 + $0xc] sm:$0xf]
  %v317 = vld [vmem:[%s4 + $0x10] sm:$0xf]
  %v318 = vld [vmem:[%s4 + $0x14] sm:$0xf]
  %v319 = vld [vmem:[%s4 + $0x18] sm:$0xf]
  %v320 = vld [vmem:[%s4 + $0x1c] sm:$0xf]
  %v325 = vunpack.c.l.b16 %v37
  %v326 = vunpack.c.l.b16 %v38
  %v327 = vunpack.c.l.b16 %v39
  %v328 = vunpack.c.l.b16 %v40
  %v329 = vpack.c.b16 %v326, %v325
  %v330 = vpack.c.b16 %v328, %v327
  %v339 = vunpack.c.l.b16 %v313
  %v340 = vunpack.c.l.b16 %v314
  %v341 = vunpack.c.l.b16 %v315
  %v342 = vunpack.c.l.b16 %v316
  %v343 = vunpack.c.l.b16 %v317
  %v344 = vunpack.c.l.b16 %v318
  %v345 = vunpack.c.l.b16 %v319
  %v346 = vunpack.c.l.b16 %v320
  %v347 = vpack.c.b16 %v340, %v339
  %v348 = vpack.c.b16 %v342, %v341
  %v349 = vpack.c.b16 %v344, %v343
  %v350 = vpack.c.b16 %v346, %v345
  %v356 = vsel %vm212, %v329, 0
  %v359 = vsel %vm212, %v330, 0
  %361 = vmatprep.subr.bf16.mxu0 0
  %362 = vmatpush1.bf16.msra.mxu0 %v347
  %363 = vmatprep.subr.bf16.mxu0 0
  %364 = vmatpush1.bf16.msra.mxu0 %v348
  %365 = vmatprep.subr.bf16.mxu0 0
  %366 = vmatpush1.bf16.msra.mxu0 %v349
  %367 = vmatprep.subr.bf16.mxu0 0
  %368 = vmatpush1.bf16.msra.mxu0 %v350
  %369 = vmatprep.subr.bf16.mxu0 0
  %370 = vmatpush1.bf16.msra.mxu0 0
  %371 = vmatprep.subr.bf16.mxu0 0
  %372 = vmatpush1.bf16.msra.mxu0 0
  %373 = vmatprep.subr.bf16.mxu0 0
  %374 = vmatpush1.bf16.msra.mxu0 0
  %375 = vmatprep.subr.bf16.mxu0 0
  %376 = vmatpush1.bf16.msra.mxu0 0
  %377 = vmatprep.subr.bf16.mxu0 0
  %378 = vmatpush1.bf16.msra.mxu0 0
  %379 = vmatprep.subr.bf16.mxu0 0
  %380 = vmatpush1.bf16.msra.mxu0 0
  %381 = vmatprep.subr.bf16.mxu0 0
  %382 = vmatpush1.bf16.msra.mxu0 0
  %383 = vmatprep.subr.bf16.mxu0 0
  %384 = vmatpush1.bf16.msra.mxu0 0
  %385 = vmatprep.subr.bf16.mxu0 0
  %386 = vmatpush1.bf16.msra.mxu0 0
  %387 = vmatprep.subr.bf16.mxu0 0
  %388 = vmatpush1.bf16.msra.mxu0 0
  %389 = vmatprep.subr.bf16.mxu0 0
  %390 = vmatpush1.bf16.msra.mxu0 0
  %391 = vmatprep.subr.bf16.mxu0 0
  %392 = vmatpush1.bf16.msra.mxu0 0
  %393 = vmatprep.mubr.bf16.mxu0 0
  %394 = vmatmul.mubr.bf16.gmra.mrb[0].mxu0 %v356
  %v395 = vpop.f32.mrb[0].mxu0
  %v396 = vadd.f32 0.0, %v395
  %v397 = vpop.f32.mrb[0].mxu0
  %v398 = vpop.f32.mrb[0].mxu0
  %v399 = vadd.f32 0.0, %v398
  %v400 = vpop.f32.mrb[0].mxu0
  %401 = vmatprep.mubr.bf16.mxu0 0
  %402 = vmatmul.mubr.bf16.gmra.mrb[0].mxu0 %v359
  %v403 = vpop.f32.mrb[0].mxu0
  %v404 = vadd.f32 0.0, %v403
  %v405 = vpop.f32.mrb[0].mxu0
  %v406 = vpop.f32.mrb[0].mxu0
  %v407 = vadd.f32 0.0, %v406
  %v408 = vpop.f32.mrb[0].mxu0
  %409 = vdwg.mxu0
  %v426 = vunpack.c.l.b16 %v297
  %v427 = vunpack.c.l.b16 %v298
  %v428 = vunpack.c.l.b16 %v299
  %v429 = vunpack.c.l.b16 %v300
  %v430 = vunpack.c.l.b16 %v301
  %v431 = vunpack.c.l.b16 %v302
  %v432 = vunpack.c.l.b16 %v303
  %v433 = vunpack.c.l.b16 %v304
  %v434 = vunpack.c.l.b16 %v305
  %v435 = vunpack.c.l.b16 %v306
  %v436 = vunpack.c.l.b16 %v307
  %v437 = vunpack.c.l.b16 %v308
  %v438 = vunpack.c.l.b16 %v309
  %v439 = vunpack.c.l.b16 %v310
  %v440 = vunpack.c.l.b16 %v311
  %v441 = vunpack.c.l.b16 %v312
  %v442 = vpack.c.b16 %v427, %v426
  %v443 = vpack.c.b16 %v429, %v428
  %v444 = vpack.c.b16 %v431, %v430
  %v445 = vpack.c.b16 %v433, %v432
  %v446 = vpack.c.b16 %v435, %v434
  %v447 = vpack.c.b16 %v437, %v436
  %v448 = vpack.c.b16 %v439, %v438
  %v449 = vpack.c.b16 %v441, %v440
  %458 = vmatprep.subr.bf16.mxu0 0
  %459 = vmatpush1.bf16.msra.mxu0 %v442
  %460 = vmatprep.subr.bf16.mxu0 0
  %461 = vmatpush1.bf16.msra.mxu0 %v443
  %462 = vmatprep.subr.bf16.mxu0 0
  %463 = vmatpush1.bf16.msra.mxu0 %v444
  %464 = vmatprep.subr.bf16.mxu0 0
  %465 = vmatpush1.bf16.msra.mxu0 %v445
  %466 = vmatprep.subr.bf16.mxu0 0
  %467 = vmatpush1.bf16.msra.mxu0 %v446
  %468 = vmatprep.subr.bf16.mxu0 0
  %469 = vmatpush1.bf16.msra.mxu0 %v447
  %470 = vmatprep.subr.bf16.mxu0 0
  %471 = vmatpush1.bf16.msra.mxu0 %v448
  %472 = vmatprep.subr.bf16.mxu0 0
  %473 = vmatpush1.bf16.msra.mxu0 %v449
  %474 = vmatprep.subr.bf16.mxu0 0
  %475 = vmatpush1.bf16.msra.mxu0 0
  %476 = vmatprep.subr.bf16.mxu0 0
  %477 = vmatpush1.bf16.msra.mxu0 0
  %478 = vmatprep.subr.bf16.mxu0 0
  %479 = vmatpush1.bf16.msra.mxu0 0
  %480 = vmatprep.subr.bf16.mxu0 0
  %481 = vmatpush1.bf16.msra.mxu0 0
  %482 = vmatprep.subr.bf16.mxu0 0
  %483 = vmatpush1.bf16.msra.mxu0 0
  %484 = vmatprep.subr.bf16.mxu0 0
  %485 = vmatpush1.bf16.msra.mxu0 0
  %486 = vmatprep.subr.bf16.mxu0 0
  %487 = vmatpush1.bf16.msra.mxu0 0
  %488 = vmatprep.subr.bf16.mxu0 0
  %489 = vmatpush1.bf16.msra.mxu0 0
  %490 = vmatprep.mubr.bf16.mxu0 0
  %491 = vmatmul.mubr.bf16.gmra.mrb[0].mxu0 %v295
  %v492 = vpop.f32.mrb[0].mxu0
  %v493 = vadd.f32 %v396, %v492
  %v494 = vpop.f32.mrb[0].mxu0
  %v495 = vpop.f32.mrb[0].mxu0
  %v496 = vadd.f32 %v399, %v495
  %v497 = vpop.f32.mrb[0].mxu0
  %498 = vmatprep.mubr.bf16.mxu0 0
  %499 = vmatmul.mubr.bf16.gmra.mrb[0].mxu0 %v296
  %v500 = vpop.f32.mrb[0].mxu0
  %v501 = vadd.f32 %v404, %v500
  %v502 = vpop.f32.mrb[0].mxu0
  %v503 = vpop.f32.mrb[0].mxu0
  %v504 = vadd.f32 %v407, %v503
  %v505 = vpop.f32.mrb[0].mxu0
  %506 = vdwg.mxu0
  %s507 = scalar_lea.vmem %s3, 64
  %v508 = vld [vmem:[%s507] sm:$0xf]
  %v509 = vld [vmem:[%s507 + $0x4] sm:$0xf]
  %v510 = vld [vmem:[%s507 + $0x8] sm:$0xf]
  %v511 = vld [vmem:[%s507 + $0xc] sm:$0xf]
  %v512 = vld [vmem:[%s507 + $0x10] sm:$0xf]
  %v513 = vld [vmem:[%s507 + $0x14] sm:$0xf]
  %v514 = vld [vmem:[%s507 + $0x18] sm:$0xf]
  %v515 = vld [vmem:[%s507 + $0x1c] sm:$0xf]
  %v516 = vld [vmem:[%s507 + $0x20] sm:$0xf]
  %v517 = vld [vmem:[%s507 + $0x24] sm:$0xf]
  %v518 = vld [vmem:[%s507 + $0x28] sm:$0xf]
  %v519 = vld [vmem:[%s507 + $0x2c] sm:$0xf]
  %v520 = vld [vmem:[%s507 + $0x30] sm:$0xf]
  %v521 = vld [vmem:[%s507 + $0x34] sm:$0xf]
  %v522 = vld [vmem:[%s507 + $0x38] sm:$0xf]
  %v523 = vld [vmem:[%s507 + $0x3c] sm:$0xf]
  %s524 = scalar_lea.vmem %s4, 32
  %v525 = vld [vmem:[%s524] sm:$0xf]
  %v526 = vld [vmem:[%s524 + $0x4] sm:$0xf]
  %v527 = vld [vmem:[%s524 + $0x8] sm:$0xf]
  %v528 = vld [vmem:[%s524 + $0xc] sm:$0xf]
  %v529 = vld [vmem:[%s524 + $0x10] sm:$0xf]
  %v530 = vld [vmem:[%s524 + $0x14] sm:$0xf]
  %v531 = vld [vmem:[%s524 + $0x18] sm:$0xf]
  %v532 = vld [vmem:[%s524 + $0x1c] sm:$0xf]
  %v541 = vunpack.c.l.b16 %v525
  %v542 = vunpack.c.l.b16 %v526
  %v543 = vunpack.c.l.b16 %v527
  %v544 = vunpack.c.l.b16 %v528
  %v545 = vunpack.c.l.b16 %v529
  %v546 = vunpack.c.l.b16 %v530
  %v547 = vunpack.c.l.b16 %v531
  %v548 = vunpack.c.l.b16 %v532
  %v549 = vpack.c.b16 %v542, %v541
  %v550 = vpack.c.b16 %v544, %v543
  %v551 = vpack.c.b16 %v546, %v545
  %v552 = vpack.c.b16 %v548, %v547
  %557 = vmatprep.subr.bf16.mxu0 0
  %558 = vmatpush1.bf16.msra.mxu0 %v549
  %559 = vmatprep.subr.bf16.mxu0 0
  %560 = vmatpush1.bf16.msra.mxu0 %v550
  %561 = vmatprep.subr.bf16.mxu0 0
  %562 = vmatpush1.bf16.msra.mxu0 %v551
  %563 = vmatprep.subr.bf16.mxu0 0
  %564 = vmatpush1.bf16.msra.mxu0 %v552
  %565 = vmatprep.subr.bf16.mxu0 0
  %566 = vmatpush1.bf16.msra.mxu0 0
  %567 = vmatprep.subr.bf16.mxu0 0
  %568 = vmatpush1.bf16.msra.mxu0 0
  %569 = vmatprep.subr.bf16.mxu0 0
  %570 = vmatpush1.bf16.msra.mxu0 0
  %571 = vmatprep.subr.bf16.mxu0 0
  %572 = vmatpush1.bf16.msra.mxu0 0
  %573 = vmatprep.subr.bf16.mxu0 0
  %574 = vmatpush1.bf16.msra.mxu0 0
  %575 = vmatprep.subr.bf16.mxu0 0
  %576 = vmatpush1.bf16.msra.mxu0 0
  %577 = vmatprep.subr.bf16.mxu0 0
  %578 = vmatpush1.bf16.msra.mxu0 0
  %579 = vmatprep.subr.bf16.mxu0 0
  %580 = vmatpush1.bf16.msra.mxu0 0
  %581 = vmatprep.subr.bf16.mxu0 0
  %582 = vmatpush1.bf16.msra.mxu0 0
  %583 = vmatprep.subr.bf16.mxu0 0
  %584 = vmatpush1.bf16.msra.mxu0 0
  %585 = vmatprep.subr.bf16.mxu0 0
  %586 = vmatpush1.bf16.msra.mxu0 0
  %587 = vmatprep.subr.bf16.mxu0 0
  %588 = vmatpush1.bf16.msra.mxu0 0
  %589 = vmatprep.mubr.bf16.mxu0 0
  %590 = vmatmul.mubr.bf16.gmra.mrb[0].mxu0 %v356
  %v591 = vpop.f32.mrb[0].mxu0
  %v592 = vadd.f32 0.0, %v591
  %v593 = vpop.f32.mrb[0].mxu0
  %v594 = vpop.f32.mrb[0].mxu0
  %v595 = vadd.f32 0.0, %v594
  %v596 = vpop.f32.mrb[0].mxu0
  %597 = vmatprep.mubr.bf16.mxu0 0
  %598 = vmatmul.mubr.bf16.gmra.mrb[0].mxu0 %v359
  %v599 = vpop.f32.mrb[0].mxu0
  %v600 = vadd.f32 0.0, %v599
  %v601 = vpop.f32.mrb[0].mxu0
  %v602 = vpop.f32.mrb[0].mxu0
  %v603 = vadd.f32 0.0, %v602
  %v604 = vpop.f32.mrb[0].mxu0
  %605 = vdwg.mxu0
  %v622 = vunpack.c.l.b16 %v508
  %v623 = vunpack.c.l.b16 %v509
  %v624 = vunpack.c.l.b16 %v510
  %v625 = vunpack.c.l.b16 %v511
  %v626 = vunpack.c.l.b16 %v512
  %v627 = vunpack.c.l.b16 %v513
  %v628 = vunpack.c.l.b16 %v514
  %v629 = vunpack.c.l.b16 %v515
  %v630 = vunpack.c.l.b16 %v516
  %v631 = vunpack.c.l.b16 %v517
  %v632 = vunpack.c.l.b16 %v518
  %v633 = vunpack.c.l.b16 %v519
  %v634 = vunpack.c.l.b16 %v520
  %v635 = vunpack.c.l.b16 %v521
  %v636 = vunpack.c.l.b16 %v522
  %v637 = vunpack.c.l.b16 %v523
  %v638 = vpack.c.b16 %v623, %v622
  %v639 = vpack.c.b16 %v625, %v624
  %v640 = vpack.c.b16 %v627, %v626
  %v641 = vpack.c.b16 %v629, %v628
  %v642 = vpack.c.b16 %v631, %v630
  %v643 = vpack.c.b16 %v633, %v632
  %v644 = vpack.c.b16 %v635, %v634
  %v645 = vpack.c.b16 %v637, %v636
  %654 = vmatprep.subr.bf16.mxu0 0
  %655 = vmatpush1.bf16.msra.mxu0 %v638
  %656 = vmatprep.subr.bf16.mxu0 0
  %657 = vmatpush1.bf16.msra.mxu0 %v639
  %658 = vmatprep.subr.bf16.mxu0 0
  %659 = vmatpush1.bf16.msra.mxu0 %v640
  %660 = vmatprep.subr.bf16.mxu0 0
  %661 = vmatpush1.bf16.msra.mxu0 %v641
  %662 = vmatprep.subr.bf16.mxu0 0
  %663 = vmatpush1.bf16.msra.mxu0 %v642
  %664 = vmatprep.subr.bf16.mxu0 0
  %665 = vmatpush1.bf16.msra.mxu0 %v643
  %666 = vmatprep.subr.bf16.mxu0 0
  %667 = vmatpush1.bf16.msra.mxu0 %v644
  %668 = vmatprep.subr.bf16.mxu0 0
  %669 = vmatpush1.bf16.msra.mxu0 %v645
  %670 = vmatprep.subr.bf16.mxu0 0
  %671 = vmatpush1.bf16.msra.mxu0 0
  %672 = vmatprep.subr.bf16.mxu0 0
  %673 = vmatpush1.bf16.msra.mxu0 0
  %674 = vmatprep.subr.bf16.mxu0 0
  %675 = vmatpush1.bf16.msra.mxu0 0
  %676 = vmatprep.subr.bf16.mxu0 0
  %677 = vmatpush1.bf16.msra.mxu0 0
  %678 = vmatprep.subr.bf16.mxu0 0
  %679 = vmatpush1.bf16.msra.mxu0 0
  %680 = vmatprep.subr.bf16.mxu0 0
  %681 = vmatpush1.bf16.msra.mxu0 0
  %682 = vmatprep.subr.bf16.mxu0 0
  %683 = vmatpush1.bf16.msra.mxu0 0
  %684 = vmatprep.subr.bf16.mxu0 0
  %685 = vmatpush1.bf16.msra.mxu0 0
  %686 = vmatprep.mubr.bf16.mxu0 0
  %687 = vmatmul.mubr.bf16.gmra.mrb[0].mxu0 %v295
  %v688 = vpop.f32.mrb[0].mxu0
  %v689 = vadd.f32 %v592, %v688
  %v690 = vpop.f32.mrb[0].mxu0
  %v691 = vpop.f32.mrb[0].mxu0
  %v692 = vadd.f32 %v595, %v691
  %v693 = vpop.f32.mrb[0].mxu0
  %694 = vmatprep.mubr.bf16.mxu0 0
  %695 = vmatmul.mubr.bf16.gmra.mrb[0].mxu0 %v296
  %v696 = vpop.f32.mrb[0].mxu0
  %v697 = vadd.f32 %v600, %v696
  %v698 = vpop.f32.mrb[0].mxu0
  %v699 = vpop.f32.mrb[0].mxu0
  %v700 = vadd.f32 %v603, %v699
  %v701 = vpop.f32.mrb[0].mxu0
  %702 = vdwg.mxu0
  %s703 = scalar_lea.vmem %s3, 128
  %v704 = vld [vmem:[%s703] sm:$0xf]
  %v705 = vld [vmem:[%s703 + $0x4] sm:$0xf]
  %v706 = vld [vmem:[%s703 + $0x8] sm:$0xf]
  %v707 = vld [vmem:[%s703 + $0xc] sm:$0xf]
  %v708 = vld [vmem:[%s703 + $0x10] sm:$0xf]
  %v709 = vld [vmem:[%s703 + $0x14] sm:$0xf]
  %v710 = vld [vmem:[%s703 + $0x18] sm:$0xf]
  %v711 = vld [vmem:[%s703 + $0x1c] sm:$0xf]
  %v712 = vld [vmem:[%s703 + $0x20] sm:$0xf]
  %v713 = vld [vmem:[%s703 + $0x24] sm:$0xf]
  %v714 = vld [vmem:[%s703 + $0x28] sm:$0xf]
  %v715 = vld [vmem:[%s703 + $0x2c] sm:$0xf]
  %v716 = vld [vmem:[%s703 + $0x30] sm:$0xf]
  %v717 = vld [vmem:[%s703 + $0x34] sm:$0xf]
  %v718 = vld [vmem:[%s703 + $0x38] sm:$0xf]
  %v719 = vld [vmem:[%s703 + $0x3c] sm:$0xf]
  %s720 = scalar_lea.vmem %s4, 64
  %v721 = vld [vmem:[%s720] sm:$0xf]
  %v722 = vld [vmem:[%s720 + $0x4] sm:$0xf]
  %v723 = vld [vmem:[%s720 + $0x8] sm:$0xf]
  %v724 = vld [vmem:[%s720 + $0xc] sm:$0xf]
  %v725 = vld [vmem:[%s720 + $0x10] sm:$0xf]
  %v726 = vld [vmem:[%s720 + $0x14] sm:$0xf]
  %v727 = vld [vmem:[%s720 + $0x18] sm:$0xf]
  %v728 = vld [vmem:[%s720 + $0x1c] sm:$0xf]
  %v737 = vunpack.c.l.b16 %v721
  %v738 = vunpack.c.l.b16 %v722
  %v739 = vunpack.c.l.b16 %v723
  %v740 = vunpack.c.l.b16 %v724
  %v741 = vunpack.c.l.b16 %v725
  %v742 = vunpack.c.l.b16 %v726
  %v743 = vunpack.c.l.b16 %v727
  %v744 = vunpack.c.l.b16 %v728
  %v745 = vpack.c.b16 %v738, %v737
  %v746 = vpack.c.b16 %v740, %v739
  %v747 = vpack.c.b16 %v742, %v741
  %v748 = vpack.c.b16 %v744, %v743
  %753 = vmatprep.subr.bf16.mxu0 0
  %754 = vmatpush1.bf16.msra.mxu0 %v745
  %755 = vmatprep.subr.bf16.mxu0 0
  %756 = vmatpush1.bf16.msra.mxu0 %v746
  %757 = vmatprep.subr.bf16.mxu0 0
  %758 = vmatpush1.bf16.msra.mxu0 %v747
  %759 = vmatprep.subr.bf16.mxu0 0
  %760 = vmatpush1.bf16.msra.mxu0 %v748
  %761 = vmatprep.subr.bf16.mxu0 0
  %762 = vmatpush1.bf16.msra.mxu0 0
  %763 = vmatprep.subr.bf16.mxu0 0
  %764 = vmatpush1.bf16.msra.mxu0 0
  %765 = vmatprep.subr.bf16.mxu0 0
  %766 = vmatpush1.bf16.msra.mxu0 0
  %767 = vmatprep.subr.bf16.mxu0 0
  %768 = vmatpush1.bf16.msra.mxu0 0
  %769 = vmatprep.subr.bf16.mxu0 0
  %770 = vmatpush1.bf16.msra.mxu0 0
  %771 = vmatprep.subr.bf16.mxu0 0
  %772 = vmatpush1.bf16.msra.mxu0 0
  %773 = vmatprep.subr.bf16.mxu0 0
  %774 = vmatpush1.bf16.msra.mxu0 0
  %775 = vmatprep.subr.bf16.mxu0 0
  %776 = vmatpush1.bf16.msra.mxu0 0
  %777 = vmatprep.subr.bf16.mxu0 0
  %778 = vmatpush1.bf16.msra.mxu0 0
  %779 = vmatprep.subr.bf16.mxu0 0
  %780 = vmatpush1.bf16.msra.mxu0 0
  %781 = vmatprep.subr.bf16.mxu0 0
  %782 = vmatpush1.bf16.msra.mxu0 0
  %783 = vmatprep.subr.bf16.mxu0 0
  %784 = vmatpush1.bf16.msra.mxu0 0
  %785 = vmatprep.mubr.bf16.mxu0 0
  %786 = vmatmul.mubr.bf16.gmra.mrb[0].mxu0 %v356
  %v787 = vpop.f32.mrb[0].mxu0
  %v788 = vadd.f32 0.0, %v787
  %v789 = vpop.f32.mrb[0].mxu0
  %v790 = vpop.f32.mrb[0].mxu0
  %v791 = vadd.f32 0.0, %v790
  %v792 = vpop.f32.mrb[0].mxu0
  %793 = vmatprep.mubr.bf16.mxu0 0
  %794 = vmatmul.mubr.bf16.gmra.mrb[0].mxu0 %v359
  %v795 = vpop.f32.mrb[0].mxu0
  %v796 = vadd.f32 0.0, %v795
  %v797 = vpop.f32.mrb[0].mxu0
  %v798 = vpop.f32.mrb[0].mxu0
  %v799 = vadd.f32 0.0, %v798
  %v800 = vpop.f32.mrb[0].mxu0
  %801 = vdwg.mxu0
  %v818 = vunpack.c.l.b16 %v704
  %v819 = vunpack.c.l.b16 %v705
  %v820 = vunpack.c.l.b16 %v706
  %v821 = vunpack.c.l.b16 %v707
  %v822 = vunpack.c.l.b16 %v708
  %v823 = vunpack.c.l.b16 %v709
  %v824 = vunpack.c.l.b16 %v710
  %v825 = vunpack.c.l.b16 %v711
  %v826 = vunpack.c.l.b16 %v712
  %v827 = vunpack.c.l.b16 %v713
  %v828 = vunpack.c.l.b16 %v714
  %v829 = vunpack.c.l.b16 %v715
  %v830 = vunpack.c.l.b16 %v716
  %v831 = vunpack.c.l.b16 %v717
  %v832 = vunpack.c.l.b16 %v718
  %v833 = vunpack.c.l.b16 %v719
  %v834 = vpack.c.b16 %v819, %v818
  %v835 = vpack.c.b16 %v821, %v820
  %v836 = vpack.c.b16 %v823, %v822
  %v837 = vpack.c.b16 %v825, %v824
  %v838 = vpack.c.b16 %v827, %v826
  %v839 = vpack.c.b16 %v829, %v828
  %v840 = vpack.c.b16 %v831, %v830
  %v841 = vpack.c.b16 %v833, %v832
  %850 = vmatprep.subr.bf16.mxu0 0
  %851 = vmatpush1.bf16.msra.mxu0 %v834
  %852 = vmatprep.subr.bf16.mxu0 0
  %853 = vmatpush1.bf16.msra.mxu0 %v835
  %854 = vmatprep.subr.bf16.mxu0 0
  %855 = vmatpush1.bf16.msra.mxu0 %v836
  %856 = vmatprep.subr.bf16.mxu0 0
  %857 = vmatpush1.bf16.msra.mxu0 %v837
  %858 = vmatprep.subr.bf16.mxu0 0
  %859 = vmatpush1.bf16.msra.mxu0 %v838
  %860 = vmatprep.subr.bf16.mxu0 0
  %861 = vmatpush1.bf16.msra.mxu0 %v839
  %862 = vmatprep.subr.bf16.mxu0 0
  %863 = vmatpush1.bf16.msra.mxu0 %v840
  %864 = vmatprep.subr.bf16.mxu0 0
  %865 = vmatpush1.bf16.msra.mxu0 %v841
  %866 = vmatprep.subr.bf16.mxu0 0
  %867 = vmatpush1.bf16.msra.mxu0 0
  %868 = vmatprep.subr.bf16.mxu0 0
  %869 = vmatpush1.bf16.msra.mxu0 0
  %870 = vmatprep.subr.bf16.mxu0 0
  %871 = vmatpush1.bf16.msra.mxu0 0
  %872 = vmatprep.subr.bf16.mxu0 0
  %873 = vmatpush1.bf16.msra.mxu0 0
  %874 = vmatprep.subr.bf16.mxu0 0
  %875 = vmatpush1.bf16.msra.mxu0 0
  %876 = vmatprep.subr.bf16.mxu0 0
  %877 = vmatpush1.bf16.msra.mxu0 0
  %878 = vmatprep.subr.bf16.mxu0 0
  %879 = vmatpush1.bf16.msra.mxu0 0
  %880 = vmatprep.subr.bf16.mxu0 0
  %881 = vmatpush1.bf16.msra.mxu0 0
  %882 = vmatprep.mubr.bf16.mxu0 0
  %883 = vmatmul.mubr.bf16.gmra.mrb[0].mxu0 %v295
  %v884 = vpop.f32.mrb[0].mxu0
  %v885 = vadd.f32 %v788, %v884
  %v886 = vpop.f32.mrb[0].mxu0
  %v887 = vpop.f32.mrb[0].mxu0
  %v888 = vadd.f32 %v791, %v887
  %v889 = vpop.f32.mrb[0].mxu0
  %890 = vmatprep.mubr.bf16.mxu0 0
  %891 = vmatmul.mubr.bf16.gmra.mrb[0].mxu0 %v296
  %v892 = vpop.f32.mrb[0].mxu0
  %v893 = vadd.f32 %v796, %v892
  %v894 = vpop.f32.mrb[0].mxu0
  %v895 = vpop.f32.mrb[0].mxu0
  %v896 = vadd.f32 %v799, %v895
  %v897 = vpop.f32.mrb[0].mxu0
  %898 = vdwg.mxu0
  %v900 = vrot.slane %v504, 7
  %vm905 = vcmask 1040384
  %v906 = vrot.slane %v493, 7
  %v907 = vrot.slane %v496, 7
  %v908 = vsel %vm905, %v906, %v907
  %v909 = vrot.slane %v501, 7
  %v910 = vsel %vm905, %v907, %v909
  %v911 = vsel %vm905, %v909, %v900
  %v916 = vsel %vm905, %v900, %v906
  %v917 = vsel %vm146, 1, 0
  %v918 = vsel %vm147, 1, 0
  %v919 = vsel %vm148, 1, 0
  %v920 = vsel %vm149, 1, 0
  %vm921 = vcmp.eq.s32.totalorder %v917, 1
  %vm922 = vcmp.eq.s32.totalorder %v918, 1
  %vm923 = vcmp.eq.s32.totalorder %v919, 1
  %vm924 = vcmp.eq.s32.totalorder %v920, 1
  %v925 = vsel %vm921, 0.0, %v916
  %v926 = vsel %vm922, 0.0, %v908
  %v927 = vsel %vm923, 0.0, %v910
  %v928 = vsel %vm924, 0.0, %v911
  %v929 = vadd.f32 %v689, %v925
  %v930 = vadd.f32 %v692, %v926
  %v931 = vadd.f32 %v697, %v927
  %v932 = vadd.f32 %v700, %v928
  %vm937 = vcmask 1046528
  %v938 = vrot.slane %v885, 1
  %v939 = vrot.slane %v888, 1
  %v940 = vsel %vm937, %v938, %v939
  %v941 = vrot.slane %v893, 1
  %v942 = vsel %vm937, %v939, %v941
  %v943 = vrot.slane %v896, 1
  %v944 = vsel %vm937, %v941, %v943
  %v950 = vsel %vm937, %v943, %v938
  %v951 = vsel %vm150, 1, 0
  %v952 = vsel %vm151, 1, 0
  %v953 = vsel %vm152, 1, 0
  %v954 = vsel %vm153, 1, 0
  %vm955 = vcmp.eq.s32.totalorder %v951, 1
  %vm956 = vcmp.eq.s32.totalorder %v952, 1
  %vm957 = vcmp.eq.s32.totalorder %v953, 1
  %vm958 = vcmp.eq.s32.totalorder %v954, 1
  %v959 = vsel %vm955, 0.0, %v940
  %v960 = vsel %vm956, 0.0, %v942
  %v961 = vsel %vm957, 0.0, %v944
  %v962 = vsel %vm958, 0.0, %v950
  %v963 = vadd.f32 %v929, %v959
  %v964 = vadd.f32 %v930, %v960
  %v965 = vadd.f32 %v931, %v961
  %v966 = vadd.f32 %v932, %v962
  %v967 = vld [vmem:[%s7] sm:$0x1]
  %v969 = vlaneseq
  %v970 = vshrl.u32 %v969, 7
  %v971 = vsub.s32 0, %v970
  %v972 = vrot.slane %v967, %v971
  %v974 = vadd.f32 %v963, %v972
  %v975 = vadd.f32 %v964, %v972
  %v976 = vadd.f32 %v965, %v972
  %v977 = vadd.f32 %v966, %v972
  %v978 = vmax.f32 %v974, 0.0
  %v979 = vmax.f32 %v975, 0.0
  %v980 = vmax.f32 %v976, 0.0
  %v981 = vmax.f32 %v977, 0.0
  %v982 = vpack.c.bf16 %v979, %v978
  %v983 = vpack.c.bf16 %v981, %v980
  %v984 = vld [vmem:[%s5] sm:$0xf]
  %v985 = vld [vmem:[%s5 + $0x4] sm:$0xf]
  %v986 = vld [vmem:[%s5 + $0x8] sm:$0xf]
  %v987 = vld [vmem:[%s5 + $0xc] sm:$0xf]
  %v988 = vld [vmem:[%s5 + $0x10] sm:$0xf]
  %v989 = vld [vmem:[%s5 + $0x14] sm:$0xf]
  %v990 = vld [vmem:[%s5 + $0x18] sm:$0xf]
  %v991 = vld [vmem:[%s5 + $0x1c] sm:$0xf]
  %v992 = vld [vmem:[%s5 + $0x20] sm:$0xf]
  %v993 = vld [vmem:[%s5 + $0x24] sm:$0xf]
  %v994 = vld [vmem:[%s5 + $0x28] sm:$0xf]
  %v995 = vld [vmem:[%s5 + $0x2c] sm:$0xf]
  %v996 = vld [vmem:[%s5 + $0x30] sm:$0xf]
  %v997 = vld [vmem:[%s5 + $0x34] sm:$0xf]
  %v998 = vld [vmem:[%s5 + $0x38] sm:$0xf]
  %v999 = vld [vmem:[%s5 + $0x3c] sm:$0xf]
  %v1016 = vunpack.c.l.b16 %v984
  %v1017 = vunpack.c.l.b16 %v985
  %v1018 = vunpack.c.l.b16 %v986
  %v1019 = vunpack.c.l.b16 %v987
  %v1020 = vunpack.c.l.b16 %v988
  %v1021 = vunpack.c.l.b16 %v989
  %v1022 = vunpack.c.l.b16 %v990
  %v1023 = vunpack.c.l.b16 %v991
  %v1024 = vunpack.c.l.b16 %v992
  %v1025 = vunpack.c.l.b16 %v993
  %v1026 = vunpack.c.l.b16 %v994
  %v1027 = vunpack.c.l.b16 %v995
  %v1028 = vunpack.c.l.b16 %v996
  %v1029 = vunpack.c.l.b16 %v997
  %v1030 = vunpack.c.l.b16 %v998
  %v1031 = vunpack.c.l.b16 %v999
  %v1032 = vpack.c.b16 %v1017, %v1016
  %v1033 = vpack.c.b16 %v1019, %v1018
  %v1034 = vpack.c.b16 %v1021, %v1020
  %v1035 = vpack.c.b16 %v1023, %v1022
  %v1036 = vpack.c.b16 %v1025, %v1024
  %v1037 = vpack.c.b16 %v1027, %v1026
  %v1038 = vpack.c.b16 %v1029, %v1028
  %v1039 = vpack.c.b16 %v1031, %v1030
  %1048 = vmatprep.subr.bf16.mxu0 0
  %1049 = vmatpush1.bf16.msra.mxu0 %v1032
  %1050 = vmatprep.subr.bf16.mxu0 0
  %1051 = vmatpush1.bf16.msra.mxu0 %v1033
  %1052 = vmatprep.subr.bf16.mxu0 0
  %1053 = vmatpush1.bf16.msra.mxu0 %v1034
  %1054 = vmatprep.subr.bf16.mxu0 0
  %1055 = vmatpush1.bf16.msra.mxu0 %v1035
  %1056 = vmatprep.subr.bf16.mxu0 0
  %1057 = vmatpush1.bf16.msra.mxu0 %v1036
  %1058 = vmatprep.subr.bf16.mxu0 0
  %1059 = vmatpush1.bf16.msra.mxu0 %v1037
  %1060 = vmatprep.subr.bf16.mxu0 0
  %1061 = vmatpush1.bf16.msra.mxu0 %v1038
  %1062 = vmatprep.subr.bf16.mxu0 0
  %1063 = vmatpush1.bf16.msra.mxu0 %v1039
  %1064 = vmatprep.subr.bf16.mxu0 0
  %1065 = vmatpush1.bf16.msra.mxu0 0
  %1066 = vmatprep.subr.bf16.mxu0 0
  %1067 = vmatpush1.bf16.msra.mxu0 0
  %1068 = vmatprep.subr.bf16.mxu0 0
  %1069 = vmatpush1.bf16.msra.mxu0 0
  %1070 = vmatprep.subr.bf16.mxu0 0
  %1071 = vmatpush1.bf16.msra.mxu0 0
  %1072 = vmatprep.subr.bf16.mxu0 0
  %1073 = vmatpush1.bf16.msra.mxu0 0
  %1074 = vmatprep.subr.bf16.mxu0 0
  %1075 = vmatpush1.bf16.msra.mxu0 0
  %1076 = vmatprep.subr.bf16.mxu0 0
  %1077 = vmatpush1.bf16.msra.mxu0 0
  %1078 = vmatprep.subr.bf16.mxu0 0
  %1079 = vmatpush1.bf16.msra.mxu0 0
  %1080 = vmatprep.mubr.bf16.mxu0 0
  %1081 = vmatmul.mubr.bf16.gmra.mrb[0].mxu0 %v982
  %v1082 = vpop.f32.mrb[0].mxu0
  %v1083 = vadd.f32 0.0, %v1082
  %v1084 = vpop.f32.mrb[0].mxu0
  %v1085 = vpop.f32.mrb[0].mxu0
  %v1086 = vadd.f32 0.0, %v1085
  %v1087 = vpop.f32.mrb[0].mxu0
  %1088 = vmatprep.mubr.bf16.mxu0 0
  %1089 = vmatmul.mubr.bf16.gmra.mrb[0].mxu0 %v983
  %v1090 = vpop.f32.mrb[0].mxu0
  %v1091 = vadd.f32 0.0, %v1090
  %v1092 = vpop.f32.mrb[0].mxu0
  %v1093 = vpop.f32.mrb[0].mxu0
  %v1094 = vadd.f32 0.0, %v1093
  %v1095 = vpop.f32.mrb[0].mxu0
  %1096 = vdwg.mxu0
  %s1097 = scalar_lea.vmem %s5, 64
  %v1098 = vld [vmem:[%s1097] sm:$0xf]
  %v1099 = vld [vmem:[%s1097 + $0x4] sm:$0xf]
  %v1100 = vld [vmem:[%s1097 + $0x8] sm:$0xf]
  %v1101 = vld [vmem:[%s1097 + $0xc] sm:$0xf]
  %v1102 = vld [vmem:[%s1097 + $0x10] sm:$0xf]
  %v1103 = vld [vmem:[%s1097 + $0x14] sm:$0xf]
  %v1104 = vld [vmem:[%s1097 + $0x18] sm:$0xf]
  %v1105 = vld [vmem:[%s1097 + $0x1c] sm:$0xf]
  %v1106 = vld [vmem:[%s1097 + $0x20] sm:$0xf]
  %v1107 = vld [vmem:[%s1097 + $0x24] sm:$0xf]
  %v1108 = vld [vmem:[%s1097 + $0x28] sm:$0xf]
  %v1109 = vld [vmem:[%s1097 + $0x2c] sm:$0xf]
  %v1110 = vld [vmem:[%s1097 + $0x30] sm:$0xf]
  %v1111 = vld [vmem:[%s1097 + $0x34] sm:$0xf]
  %v1112 = vld [vmem:[%s1097 + $0x38] sm:$0xf]
  %v1113 = vld [vmem:[%s1097 + $0x3c] sm:$0xf]
  %s1114 = scalar_lea.vmem %s5, 128
  %v1115 = vld [vmem:[%s1114] sm:$0xf]
  %v1116 = vld [vmem:[%s1114 + $0x4] sm:$0xf]
  %v1117 = vld [vmem:[%s1114 + $0x8] sm:$0xf]
  %v1118 = vld [vmem:[%s1114 + $0xc] sm:$0xf]
  %v1119 = vld [vmem:[%s1114 + $0x10] sm:$0xf]
  %v1120 = vld [vmem:[%s1114 + $0x14] sm:$0xf]
  %v1121 = vld [vmem:[%s1114 + $0x18] sm:$0xf]
  %v1122 = vld [vmem:[%s1114 + $0x1c] sm:$0xf]
  %v1123 = vld [vmem:[%s1114 + $0x20] sm:$0xf]
  %v1124 = vld [vmem:[%s1114 + $0x24] sm:$0xf]
  %v1125 = vld [vmem:[%s1114 + $0x28] sm:$0xf]
  %v1126 = vld [vmem:[%s1114 + $0x2c] sm:$0xf]
  %v1127 = vld [vmem:[%s1114 + $0x30] sm:$0xf]
  %v1128 = vld [vmem:[%s1114 + $0x34] sm:$0xf]
  %v1129 = vld [vmem:[%s1114 + $0x38] sm:$0xf]
  %v1130 = vld [vmem:[%s1114 + $0x3c] sm:$0xf]
  %v1147 = vunpack.c.l.b16 %v1115
  %v1148 = vunpack.c.l.b16 %v1116
  %v1149 = vunpack.c.l.b16 %v1117
  %v1150 = vunpack.c.l.b16 %v1118
  %v1151 = vunpack.c.l.b16 %v1119
  %v1152 = vunpack.c.l.b16 %v1120
  %v1153 = vunpack.c.l.b16 %v1121
  %v1154 = vunpack.c.l.b16 %v1122
  %v1155 = vunpack.c.l.b16 %v1123
  %v1156 = vunpack.c.l.b16 %v1124
  %v1157 = vunpack.c.l.b16 %v1125
  %v1158 = vunpack.c.l.b16 %v1126
  %v1159 = vunpack.c.l.b16 %v1127
  %v1160 = vunpack.c.l.b16 %v1128
  %v1161 = vunpack.c.l.b16 %v1129
  %v1162 = vunpack.c.l.b16 %v1130
  %v1163 = vpack.c.b16 %v1148, %v1147
  %v1164 = vpack.c.b16 %v1150, %v1149
  %v1165 = vpack.c.b16 %v1152, %v1151
  %v1166 = vpack.c.b16 %v1154, %v1153
  %v1167 = vpack.c.b16 %v1156, %v1155
  %v1168 = vpack.c.b16 %v1158, %v1157
  %v1169 = vpack.c.b16 %v1160, %v1159
  %v1170 = vpack.c.b16 %v1162, %v1161
  %1179 = vmatprep.subr.bf16.mxu0 0
  %1180 = vmatpush1.bf16.msra.mxu0 %v1163
  %1181 = vmatprep.subr.bf16.mxu0 0
  %1182 = vmatpush1.bf16.msra.mxu0 %v1164
  %1183 = vmatprep.subr.bf16.mxu0 0
  %1184 = vmatpush1.bf16.msra.mxu0 %v1165
  %1185 = vmatprep.subr.bf16.mxu0 0
  %1186 = vmatpush1.bf16.msra.mxu0 %v1166
  %1187 = vmatprep.subr.bf16.mxu0 0
  %1188 = vmatpush1.bf16.msra.mxu0 %v1167
  %1189 = vmatprep.subr.bf16.mxu0 0
  %1190 = vmatpush1.bf16.msra.mxu0 %v1168
  %1191 = vmatprep.subr.bf16.mxu0 0
  %1192 = vmatpush1.bf16.msra.mxu0 %v1169
  %1193 = vmatprep.subr.bf16.mxu0 0
  %1194 = vmatpush1.bf16.msra.mxu0 %v1170
  %1195 = vmatprep.subr.bf16.mxu0 0
  %1196 = vmatpush1.bf16.msra.mxu0 0
  %1197 = vmatprep.subr.bf16.mxu0 0
  %1198 = vmatpush1.bf16.msra.mxu0 0
  %1199 = vmatprep.subr.bf16.mxu0 0
  %1200 = vmatpush1.bf16.msra.mxu0 0
  %1201 = vmatprep.subr.bf16.mxu0 0
  %1202 = vmatpush1.bf16.msra.mxu0 0
  %1203 = vmatprep.subr.bf16.mxu0 0
  %1204 = vmatpush1.bf16.msra.mxu0 0
  %1205 = vmatprep.subr.bf16.mxu0 0
  %1206 = vmatpush1.bf16.msra.mxu0 0
  %1207 = vmatprep.subr.bf16.mxu0 0
  %1208 = vmatpush1.bf16.msra.mxu0 0
  %1209 = vmatprep.subr.bf16.mxu0 0
  %1210 = vmatpush1.bf16.msra.mxu0 0
  %1211 = vmatprep.mubr.bf16.mxu0 0
  %1212 = vmatmul.mubr.bf16.gmra.mrb[0].mxu0 %v982
  %v1213 = vpop.f32.mrb[0].mxu0
  %v1214 = vadd.f32 0.0, %v1213
  %v1215 = vpop.f32.mrb[0].mxu0
  %v1216 = vpop.f32.mrb[0].mxu0
  %v1217 = vadd.f32 0.0, %v1216
  %v1218 = vpop.f32.mrb[0].mxu0
  %1219 = vmatprep.mubr.bf16.mxu0 0
  %1220 = vmatmul.mubr.bf16.gmra.mrb[0].mxu0 %v983
  %v1221 = vpop.f32.mrb[0].mxu0
  %v1222 = vadd.f32 0.0, %v1221
  %v1223 = vpop.f32.mrb[0].mxu0
  %v1224 = vpop.f32.mrb[0].mxu0
  %v1225 = vadd.f32 0.0, %v1224
  %v1226 = vpop.f32.mrb[0].mxu0
  %1227 = vdwg.mxu0
  %v1229 = vrot.slane %v1094, 7
  %v1234 = vrot.slane %v1083, 7
  %v1235 = vrot.slane %v1086, 7
  %v1236 = vsel %vm905, %v1234, %v1235
  %v1237 = vrot.slane %v1091, 7
  %v1238 = vsel %vm905, %v1235, %v1237
  %v1239 = vsel %vm905, %v1237, %v1229
  %v1244 = vsel %vm905, %v1229, %v1234
  %v1245 = vsel %vm921, 0.0, %v1244
  %v1246 = vsel %vm922, 0.0, %v1236
  %v1247 = vsel %vm923, 0.0, %v1238
  %v1248 = vsel %vm924, 0.0, %v1239
  %v1265 = vunpack.c.l.b16 %v1098
  %v1266 = vunpack.c.l.b16 %v1099
  %v1267 = vunpack.c.l.b16 %v1100
  %v1268 = vunpack.c.l.b16 %v1101
  %v1269 = vunpack.c.l.b16 %v1102
  %v1270 = vunpack.c.l.b16 %v1103
  %v1271 = vunpack.c.l.b16 %v1104
  %v1272 = vunpack.c.l.b16 %v1105
  %v1273 = vunpack.c.l.b16 %v1106
  %v1274 = vunpack.c.l.b16 %v1107
  %v1275 = vunpack.c.l.b16 %v1108
  %v1276 = vunpack.c.l.b16 %v1109
  %v1277 = vunpack.c.l.b16 %v1110
  %v1278 = vunpack.c.l.b16 %v1111
  %v1279 = vunpack.c.l.b16 %v1112
  %v1280 = vunpack.c.l.b16 %v1113
  %v1281 = vpack.c.b16 %v1266, %v1265
  %v1282 = vpack.c.b16 %v1268, %v1267
  %v1283 = vpack.c.b16 %v1270, %v1269
  %v1284 = vpack.c.b16 %v1272, %v1271
  %v1285 = vpack.c.b16 %v1274, %v1273
  %v1286 = vpack.c.b16 %v1276, %v1275
  %v1287 = vpack.c.b16 %v1278, %v1277
  %v1288 = vpack.c.b16 %v1280, %v1279
  %1297 = vmatprep.subr.bf16.mxu0 0
  %1298 = vmatpush1.bf16.msra.mxu0 %v1281
  %1299 = vmatprep.subr.bf16.mxu0 0
  %1300 = vmatpush1.bf16.msra.mxu0 %v1282
  %1301 = vmatprep.subr.bf16.mxu0 0
  %1302 = vmatpush1.bf16.msra.mxu0 %v1283
  %1303 = vmatprep.subr.bf16.mxu0 0
  %1304 = vmatpush1.bf16.msra.mxu0 %v1284
  %1305 = vmatprep.subr.bf16.mxu0 0
  %1306 = vmatpush1.bf16.msra.mxu0 %v1285
  %1307 = vmatprep.subr.bf16.mxu0 0
  %1308 = vmatpush1.bf16.msra.mxu0 %v1286
  %1309 = vmatprep.subr.bf16.mxu0 0
  %1310 = vmatpush1.bf16.msra.mxu0 %v1287
  %1311 = vmatprep.subr.bf16.mxu0 0
  %1312 = vmatpush1.bf16.msra.mxu0 %v1288
  %1313 = vmatprep.subr.bf16.mxu0 0
  %1314 = vmatpush1.bf16.msra.mxu0 0
  %1315 = vmatprep.subr.bf16.mxu0 0
  %1316 = vmatpush1.bf16.msra.mxu0 0
  %1317 = vmatprep.subr.bf16.mxu0 0
  %1318 = vmatpush1.bf16.msra.mxu0 0
  %1319 = vmatprep.subr.bf16.mxu0 0
  %1320 = vmatpush1.bf16.msra.mxu0 0
  %1321 = vmatprep.subr.bf16.mxu0 0
  %1322 = vmatpush1.bf16.msra.mxu0 0
  %1323 = vmatprep.subr.bf16.mxu0 0
  %1324 = vmatpush1.bf16.msra.mxu0 0
  %1325 = vmatprep.subr.bf16.mxu0 0
  %1326 = vmatpush1.bf16.msra.mxu0 0
  %1327 = vmatprep.subr.bf16.mxu0 0
  %1328 = vmatpush1.bf16.msra.mxu0 0
  %1329 = vmatprep.mubr.bf16.mxu0 0
  %1330 = vmatmul.mubr.bf16.gmra.mrb[0].mxu0 %v982
  %v1331 = vpop.f32.mrb[0].mxu0
  %v1332 = vadd.f32 %v1245, %v1331
  %v1333 = vpop.f32.mrb[0].mxu0
  %v1334 = vpop.f32.mrb[0].mxu0
  %v1335 = vadd.f32 %v1246, %v1334
  %v1336 = vpop.f32.mrb[0].mxu0
  %1337 = vmatprep.mubr.bf16.mxu0 0
  %1338 = vmatmul.mubr.bf16.gmra.mrb[0].mxu0 %v983
  %v1339 = vpop.f32.mrb[0].mxu0
  %v1340 = vadd.f32 %v1247, %v1339
  %v1341 = vpop.f32.mrb[0].mxu0
  %v1342 = vpop.f32.mrb[0].mxu0
  %v1343 = vadd.f32 %v1248, %v1342
  %v1344 = vpop.f32.mrb[0].mxu0
  %1345 = vdwg.mxu0
  %v1350 = vrot.slane %v1214, 1
  %v1351 = vrot.slane %v1217, 1
  %v1352 = vsel %vm937, %v1350, %v1351
  %v1353 = vrot.slane %v1222, 1
  %v1354 = vsel %vm937, %v1351, %v1353
  %v1355 = vrot.slane %v1225, 1
  %v1356 = vsel %vm937, %v1353, %v1355
  %v1362 = vsel %vm937, %v1355, %v1350
  %v1363 = vsel %vm955, 0.0, %v1352
  %v1364 = vsel %vm956, 0.0, %v1354
  %v1365 = vsel %vm957, 0.0, %v1356
  %v1366 = vsel %vm958, 0.0, %v1362
  %v1367 = vadd.f32 %v1332, %v1363
  %v1368 = vadd.f32 %v1335, %v1364
  %v1369 = vadd.f32 %v1340, %v1365
  %v1370 = vadd.f32 %v1343, %v1366
  %v1371 = vld [vmem:[%s8] sm:$0x1]
  %v1373 = vlaneseq
  %v1374 = vshrl.u32 %v1373, 7
  %v1375 = vsub.s32 0, %v1374
  %v1376 = vrot.slane %v1371, %v1375
  %v1378 = vadd.f32 %v1367, %v1376
  %v1379 = vadd.f32 %v1368, %v1376
  %v1380 = vadd.f32 %v1369, %v1376
  %v1381 = vadd.f32 %v1370, %v1376
  %v1382 = vmax.f32 %v1378, 0.0
  %v1383 = vmax.f32 %v1379, 0.0
  %v1384 = vmax.f32 %v1380, 0.0
  %v1385 = vmax.f32 %v1381, 0.0
  %v1386 = vpack.c.bf16 %v1383, %v1382
  %v1387 = vpack.c.bf16 %v1385, %v1384
  %v1390 = vunpack.c.l.b16 %v1386
  %v1391 = vunpack.c.h.b16 %v1386
  %v1392 = vunpack.c.l.b16 %v1387
  %v1393 = vunpack.c.h.b16 %v1387
  %v1394 = vpack.c.b16 %v1390, %v1390
  %v1395 = vpack.c.b16 %v1391, %v1391
  %v1396 = vpack.c.b16 %v1392, %v1392
  %v1397 = vpack.c.b16 %v1393, %v1393
  %1402 = vst [vmem:[%s9] sm:$0xf] %v1394
  %1403 = vst [vmem:[%s9 + $0x4] sm:$0xf] %v1395
  %1404 = vst [vmem:[%s9 + $0x8] sm:$0xf] %v1396
  %1405 = vst [vmem:[%s9 + $0xc] sm:$0xf] %v1397
  // Predicated region
  $region38: #{decode_forward.1} parent=0 // pred_check
    _
  $region39: #{decode_forward.1} parent=0 // pred_check_branch
    %1407 = sbr.rel (0) target = $region41
  $region40: #{decode_forward.1} parent=0 // pred_region
    _
  $region41: #{decode_forward.1} parent=0 // pred_fallthru
    _
  // Predicated region
  $region42: #{decode_forward.1} parent=0 // pred_check
    _
  $region43: #{decode_forward.1} parent=0 // pred_check_branch
    %1409 = sbr.rel (0) target = $region45
  $region44: #{decode_forward.1} parent=0 // pred_region
    _
  $region45: #{decode_forward.1} parent=0 // pred_fallthru
    _

</llo_original>
